<compile_context>
chip_gen: v5e
topology: v5e:2x2
jax: 0.10.0
libtpu: 0.0.40
codegen_flags: <defaults>
</compile_context>

<pallas_src>
import jax
import jax.numpy as jnp
from jax import lax
from jax.experimental import pallas as pl
from jax.experimental.pallas import tpu as pltpu

BN_EPS = 1e-5
LN_EPS = 1e-5


# --------------------------------------------------------------------------
# Fused kernel
# --------------------------------------------------------------------------
def _make_kernel(B, W, H, k, chans, D):
    """B=batch, W=length, H=freq, k=kernel_size (odd), chans=channel path,
    D=token_d_model.  All static."""
    L = len(chans) - 1
    pad = k // 2
    pow2_h = (H & (H - 1)) == 0

    def sub_step(x, direction, w_iota):
        # y[w, :] = x[clamp(w + direction, 0, W-1), :]   (direction = +/-1)
        rolled = pltpu.roll(x, (-direction) % W, 0)
        edge = W - 1 if direction > 0 else 0
        return jnp.where(w_iota == edge, x, rolled)

    def lane_step(x, direction, h_iota):
        # per H-lane-segment shift with edge replication (direction = +/-1)
        rolled = pltpu.roll(x, (-direction) % x.shape[1], 1)
        edge = H - 1 if direction > 0 else 0
        return jnp.where(h_iota == edge, x, rolled)

    def build_shifts(x, step):
        # {d: x shifted by d with replicate clamping, d in [-pad, pad]}
        # (composition of +/-1 replicate-steps == clamp(idx + d))
        shifts = {0: x}
        cur = x
        for s in range(1, pad + 1):
            cur = step(cur, +1)
            shifts[s] = cur
        cur = x
        for s in range(1, pad + 1):
            cur = step(cur, -1)
            shifts[-s] = cur
        return shifts

    def h_index(shape):
        lane = lax.broadcasted_iota(jnp.int32, shape, 1)
        return (lane & (H - 1)) if pow2_h else (lane % H)

    def bn_relu(y, a_ref, g_ref, b_ref, inv_n):
        # Train-mode BatchNorm (biased batch variance) + ReLU, single-pass stats.
        stats = jnp.concatenate(
            [jnp.sum(y, axis=0, keepdims=True),
             jnp.sum(y * y, axis=0, keepdims=True)], axis=0)           # (2, L)
        # segmented (per-channel) reduce + broadcast back to lanes in one matmul
        red = jnp.dot(stats, a_ref[...], preferred_element_type=jnp.float32)
        mean = red[0:1, :] * inv_n
        # single-pass variance; fine after ReLU / at these scales (fallback:
        # two-pass form if cancellation is ever observed).
        var = red[1:2, :] * inv_n - mean * mean
        scale = g_ref[...] * lax.rsqrt(var + BN_EPS)
        shift = b_ref[...] - mean * scale
        return jnp.maximum(y * scale + shift, 0.0)

    def kernel(*refs):
        x_ref = refs[0]                                    # (W, B*C0*H)
        layer_refs = [refs[1 + 8 * l: 1 + 8 * (l + 1)] for l in range(L)]
        wc_ref = refs[1 + 8 * L]                           # (k*H, D)
        ln_g_ref = refs[2 + 8 * L]                         # (1, D)
        ln_b_ref = refs[3 + 8 * L]                         # (1, D)
        out_ref = refs[4 + 8 * L]                          # (B*W, D)

        inv_n = 1.0 / float(B * W * H)                     # per-channel BN count
        x = x_ref[...]                                     # lanes = (b, c, h)

        # ---- Freq_Forward_block layers ----
        for l in range(L):
            cin = chans[l]
            (dw_ref, g1_ref, b1_ref, a1_ref,
             p_ref, g2_ref, b2_ref, a2_ref) = layer_refs[l]
            lin = B * cin * H

            w_iota = lax.broadcasted_iota(jnp.int32, (W, lin), 0)
            h_iota = h_index((W, lin))
            dw = dw_ref[...]                               # (k*k, lin)

            # depthwise kxk conv, replicate pad, stride 1: XLU rolls + VPU MACs
            wsh = build_shifts(x, lambda a, d: sub_step(a, d, w_iota))
            acc = None
            for j in range(k):          # tap offset along length (sublanes)
                hsh = build_shifts(wsh[j - pad],
                                   lambda a, d: lane_step(a, d, h_iota))
                for i in range(k):      # tap offset along freq (lane segments)
                    term = hsh[i - pad] * dw[i * k + j: i * k + j + 1, :]
                    acc = term if acc is None else acc + term

            # BatchNorm2d + ReLU
            t = bn_relu(acc, a1_ref, g1_ref, b1_ref, inv_n)

            # 1x1 pointwise conv == block-diagonal (b,h)-preserving channel mix
            z = jnp.dot(t, p_ref[...], preferred_element_type=jnp.float32)

            # BatchNorm2d + ReLU -> next layer's packed activation (W, B*cout*H)
            x = bn_relu(z, a2_ref, g2_ref, b2_ref, inv_n)

        # ---- squeeze(1) -> Conv1d(freq->D, k, replicate pad)
        # ---- -> LayerNorm(D) -> ReLU : one im2col matmul, one dense store ----
        w_iota = lax.broadcasted_iota(jnp.int32, (W, B * H), 0)
        wsh = build_shifts(x, lambda a, d: sub_step(a, d, w_iota))
        rows = []
        for b in range(B):
            cols = [wsh[j - pad][:, b * H:(b + 1) * H] for j in range(k)]
            rows.append(jnp.concatenate(cols, axis=1))     # (W, k*H)
        im2col = jnp.concatenate(rows, axis=0)             # (B*W, k*H)
        # TODO(synk): optionally cast im2col / wc to bfloat16 here (v6e/v7x
        # MXU-native) -- kept f32 to match the PyTorch reference numerics.
        acts = jnp.dot(im2col, wc_ref[...], preferred_element_type=jnp.float32)
        mu = jnp.mean(acts, axis=1, keepdims=True)
        var = jnp.mean((acts - mu) ** 2, axis=1, keepdims=True)
        y = (acts - mu) * lax.rsqrt(var + LN_EPS) * ln_g_ref[...] + ln_b_ref[...]
        out_ref[...] = jnp.maximum(y, 0.0)                 # single (B*W, D) store

    return kernel


# --------------------------------------------------------------------------
# Wrapper-side weight repacking (tiny, pure layout plumbing)
# --------------------------------------------------------------------------
def _prep_layer(lp, B, H, cin, cout, k):
    f32 = jnp.float32
    kk = k * k

    # depthwise weights -> per-lane vectors  dw_lane[t, (b,c,h)] = dw[c, t]
    dw = lp["dw_w"].astype(f32).reshape(cin, kk)
    dw_lane = jnp.broadcast_to(dw[None, :, :, None], (B, cin, kk, H))
    dw_lane = jnp.transpose(dw_lane, (2, 0, 1, 3)).reshape(kk, B * cin * H)

    def chan_lane(v, c):
        return jnp.broadcast_to(v.astype(f32)[None, :, None],
                                (B, c, H)).reshape(1, B * c * H)

    g1 = chan_lane(lp["g1"], cin)
    b1 = chan_lane(lp["b1"], cin)
    g2 = chan_lane(lp["g2"], cout)
    b2 = chan_lane(lp["b2"], cout)

    ones_b = jnp.ones((B, B), f32)
    ones_h = jnp.ones((H, H), f32)
    eye_b = jnp.eye(B, dtype=f32)
    eye_h = jnp.eye(H, dtype=f32)

    # A[(b,c,h),(b',c',h')] = 1 iff c == c'  (segmented reduce + broadcast)
    a1 = jnp.einsum('bB,cC,hH->bchBCH', ones_b, jnp.eye(cin, dtype=f32),
                    ones_h).reshape(B * cin * H, B * cin * H)
    a2 = jnp.einsum('bB,cC,hH->bchBCH', ones_b, jnp.eye(cout, dtype=f32),
                    ones_h).reshape(B * cout * H, B * cout * H)

    # pointwise 1x1 conv as block-diagonal mixing matrix:
    # P[(b,ci,h),(b',co,h')] = pw[co,ci] * (b==b') * (h==h')
    pw = lp["pw_w"].astype(f32).reshape(cout, cin)
    p = jnp.einsum('bB,oc,hH->bchBoH', eye_b, pw,
                   eye_h).reshape(B * cin * H, B * cout * H)

    return dw_lane, g1, b1, a1, p, g2, b2, a2


def freq_token_embedding_forward(x, params, kernel_size=3):
    """x: (B, c_in, freq, length) -- PyTorch NCHW input of Freq_TokenEmbedding.
    Returns (B, length, token_d_model)."""
    B, C0, H, W = x.shape
    layers = params["layers"]
    L = len(layers)
    k = int(layers[0]["dw_w"].shape[-1])
    assert k == kernel_size, (k, kernel_size)
    pad = k // 2
    D = int(params["wc"].shape[0])
    assert int(params["wc"].shape[1]) == H, "Conv1d in_channels must equal freq"

    # channel path derived from the parameter shapes (single source of truth)
    chans = [int(layers[0]["dw_w"].shape[0])]
    for lp in layers:
        chans.append(int(lp["pw_w"].shape[0]))
    assert chans[0] == C0 and chans[-1] == 1, chans

    f32 = jnp.float32
    # pack input (B, C0, H, W) -> (W, B*C0*H); lanes = (b, c, h).
    # Kept in the wrapper (one 16 KB fused XLA transpose) instead of 8 in-kernel
    # vxposes; negligible at these sizes.
    xt = jnp.transpose(x.astype(f32), (3, 0, 1, 2)).reshape(W, B * C0 * H)

    flat_inputs = [xt]
    for l, lp in enumerate(layers):
        flat_inputs += list(_prep_layer(lp, B, H, chans[l], chans[l + 1], k))

    # Conv1d weight (D, H, k) -> im2col layout (k*H, D): row (j*H + h) = wc[d,h,j]
    wc_mat = jnp.transpose(params["wc"].astype(f32), (2, 1, 0)).reshape(k * H, D)
    flat_inputs += [wc_mat,
                    params["ln_g"].astype(f32).reshape(1, D),
                    params["ln_b"].astype(f32).reshape(1, D)]

    vmem = pl.BlockSpec(memory_space=pltpu.MemorySpace.VMEM)
    kernel = _make_kernel(B, W, H, k, chans, D)

    # NOTE(v7x): gridless single-core launch is fine at these toy shapes; if the
    # workload scales, split over batch with a parallel grid axis / core_map.
    out = pl.pallas_call(
        kernel,
        out_shape=jax.ShapeDtypeStruct((B * W, D), f32),
        in_specs=[vmem] * len(flat_inputs),
        out_specs=vmem,
    )(*flat_inputs)
    return out.reshape(B, W, D)


# --------------------------------------------------------------------------
# Deterministic parameter init (matches module structure; conv_bias=False ->
# no conv biases; BN/LN have affine params).  PyTorch-native weight layouts.
# --------------------------------------------------------------------------
def init_params(key, c_in, token_d_model, kernel_size=3, n_conv_layers=1,
                sampling_freq=16):
    k = kernel_size
    chans = [c_in] + [max(1, int(c_in / 2 ** (i + 1)))
                      for i in range(n_conv_layers - 1)] + [1]
    keys = iter(jax.random.split(key, 6 * n_conv_layers + 4))

    def nrm(shape, scale=0.1):
        return scale * jax.random.normal(next(keys), shape, jnp.float32)

    layers = []
    for l in range(n_conv_layers):
        cin, cout = chans[l], chans[l + 1]
        layers.append(dict(
            dw_w=nrm((cin, k, k), 0.3),      # Conv2d(cin, cin, k, groups=cin)
            g1=1.0 + nrm((cin,)), b1=nrm((cin,)),
            pw_w=nrm((cout, cin), 0.3),      # Conv2d(cin, cout, 1)
            g2=1.0 + nrm((cout,)), b2=nrm((cout,)),
        ))
    return dict(
        layers=layers,
        wc=nrm((token_d_model, sampling_freq, k), 0.2),   # Conv1d(freq -> D, k)
        ln_g=1.0 + nrm((token_d_model,)),
        ln_b=nrm((token_d_model,)),
    )


if __name__ == "__main__":
    B, C_IN, FREQ, LENGTH = 2, 4, 16, 16     # x: (B, c_in, sampling_freq, length)
    TOKEN_D = 32
    K = 3
    N_LAYERS = 2                              # channel path: 4 -> 2 -> 1

    key = jax.random.PRNGKey(0)
    kx, kp = jax.random.split(key)
    x = jax.random.normal(kx, (B, C_IN, FREQ, LENGTH), jnp.float32)
    params = init_params(kp, c_in=C_IN, token_d_model=TOKEN_D, kernel_size=K,
                         n_conv_layers=N_LAYERS, sampling_freq=FREQ)

    fwd = jax.jit(lambda xx, pp: freq_token_embedding_forward(xx, pp,
                                                              kernel_size=K))
    y = jax.block_until_ready(fwd(x, params))

    assert y.shape == (B, LENGTH, TOKEN_D), y.shape
    assert bool(jnp.all(jnp.isfinite(y)))
    print("KERNEL_OK")
</pallas_src>

<mosaic_0001>
module attributes {stable_mosaic.version = 11 : i64} {
  func.func @kernel(%arg0: memref<16x128xf32, #tpu.memory_space<vmem>>, %arg1: memref<9x128xf32, #tpu.memory_space<vmem>>, %arg2: memref<1x128xf32, #tpu.memory_space<vmem>>, %arg3: memref<1x128xf32, #tpu.memory_space<vmem>>, %arg4: memref<128x128xf32, #tpu.memory_space<vmem>>, %arg5: memref<128x64xf32, #tpu.memory_space<vmem>>, %arg6: memref<1x64xf32, #tpu.memory_space<vmem>>, %arg7: memref<1x64xf32, #tpu.memory_space<vmem>>, %arg8: memref<64x64xf32, #tpu.memory_space<vmem>>, %arg9: memref<9x64xf32, #tpu.memory_space<vmem>>, %arg10: memref<1x64xf32, #tpu.memory_space<vmem>>, %arg11: memref<1x64xf32, #tpu.memory_space<vmem>>, %arg12: memref<64x64xf32, #tpu.memory_space<vmem>>, %arg13: memref<64x32xf32, #tpu.memory_space<vmem>>, %arg14: memref<1x32xf32, #tpu.memory_space<vmem>>, %arg15: memref<1x32xf32, #tpu.memory_space<vmem>>, %arg16: memref<32x32xf32, #tpu.memory_space<vmem>>, %arg17: memref<48x32xf32, #tpu.memory_space<vmem>>, %arg18: memref<1x32xf32, #tpu.memory_space<vmem>>, %arg19: memref<1x32xf32, #tpu.memory_space<vmem>>, %arg20: memref<32x32xf32, #tpu.memory_space<vmem>>) attributes {dimension_semantics = [], scalar_prefetch = 0 : i64, scratch_operands = 0 : i64, tpu.core_type = #tpu.core_type<tc>} {
    %c0 = arith.constant 0 : index
    %c0_0 = arith.constant 0 : index
    %0 = vector.load %arg0[%c0, %c0_0] : memref<16x128xf32, #tpu.memory_space<vmem>>, vector<16x128xf32>
    %1 = tpu.iota {dimensions = array<i32: 0>} : vector<16x128xi32>
    %2 = tpu.iota {dimensions = array<i32: 1>} : vector<16x128xi32>
    %c15_i32 = arith.constant 15 : i32
    %3 = vector.broadcast %c15_i32 : i32 to vector<16x128xi32>
    %4 = arith.andi %2, %3 : vector<16x128xi32>
    %c0_1 = arith.constant 0 : index
    %c0_2 = arith.constant 0 : index
    %5 = vector.load %arg1[%c0_1, %c0_2] : memref<9x128xf32, #tpu.memory_space<vmem>>, vector<9x128xf32>
    %c15_i32_3 = arith.constant 15 : i32
    %6 = tpu.dynamic_rotate %0 by %c15_i32_3 dim 0 : vector<16x128xf32>, i32 -> vector<16x128xf32>
    %c15_i32_4 = arith.constant 15 : i32
    %7 = vector.broadcast %c15_i32_4 : i32 to vector<16x128xi32>
    %8 = arith.cmpi eq, %1, %7 : vector<16x128xi32>
    %9 = arith.select %8, %0, %6 : vector<16x128xi1>, vector<16x128xf32>
    %c1_i32 = arith.constant 1 : i32
    %10 = tpu.dynamic_rotate %0 by %c1_i32 dim 0 : vector<16x128xf32>, i32 -> vector<16x128xf32>
    %c0_i32 = arith.constant 0 : i32
    %11 = vector.broadcast %c0_i32 : i32 to vector<16x128xi32>
    %12 = arith.cmpi eq, %1, %11 : vector<16x128xi32>
    %13 = arith.select %12, %0, %10 : vector<16x128xi1>, vector<16x128xf32>
    %c127_i32 = arith.constant 127 : i32
    %14 = tpu.dynamic_rotate %13 by %c127_i32 dim 1 : vector<16x128xf32>, i32 -> vector<16x128xf32>
    %c15_i32_5 = arith.constant 15 : i32
    %15 = vector.broadcast %c15_i32_5 : i32 to vector<16x128xi32>
    %16 = arith.cmpi eq, %4, %15 : vector<16x128xi32>
    %17 = arith.select %16, %13, %14 : vector<16x128xi1>, vector<16x128xf32>
    %c1_i32_6 = arith.constant 1 : i32
    %18 = tpu.dynamic_rotate %13 by %c1_i32_6 dim 1 : vector<16x128xf32>, i32 -> vector<16x128xf32>
    %c0_i32_7 = arith.constant 0 : i32
    %19 = vector.broadcast %c0_i32_7 : i32 to vector<16x128xi32>
    %20 = arith.cmpi eq, %4, %19 : vector<16x128xi32>
    %21 = arith.select %20, %13, %18 : vector<16x128xi1>, vector<16x128xf32>
    %22 = vector.extract_strided_slice %5 {offsets = [0, 0], sizes = [1, 128], strides = [1, 1]} : vector<9x128xf32> to vector<1x128xf32>
    %23 = vector.broadcast %22 : vector<1x128xf32> to vector<16x128xf32>
    %24 = arith.mulf %21, %23 : vector<16x128xf32>
    %25 = vector.extract_strided_slice %5 {offsets = [3, 0], sizes = [1, 128], strides = [1, 1]} : vector<9x128xf32> to vector<1x128xf32>
    %26 = vector.broadcast %25 : vector<1x128xf32> to vector<16x128xf32>
    %27 = arith.mulf %13, %26 : vector<16x128xf32>
    %28 = arith.addf %24, %27 : vector<16x128xf32>
    %29 = vector.extract_strided_slice %5 {offsets = [6, 0], sizes = [1, 128], strides = [1, 1]} : vector<9x128xf32> to vector<1x128xf32>
    %30 = vector.broadcast %29 : vector<1x128xf32> to vector<16x128xf32>
    %31 = arith.mulf %17, %30 : vector<16x128xf32>
    %32 = arith.addf %28, %31 : vector<16x128xf32>
    %c127_i32_8 = arith.constant 127 : i32
    %33 = tpu.dynamic_rotate %0 by %c127_i32_8 dim 1 : vector<16x128xf32>, i32 -> vector<16x128xf32>
    %c15_i32_9 = arith.constant 15 : i32
    %34 = vector.broadcast %c15_i32_9 : i32 to vector<16x128xi32>
    %35 = arith.cmpi eq, %4, %34 : vector<16x128xi32>
    %36 = arith.select %35, %0, %33 : vector<16x128xi1>, vector<16x128xf32>
    %c1_i32_10 = arith.constant 1 : i32
    %37 = tpu.dynamic_rotate %0 by %c1_i32_10 dim 1 : vector<16x128xf32>, i32 -> vector<16x128xf32>
    %c0_i32_11 = arith.constant 0 : i32
    %38 = vector.broadcast %c0_i32_11 : i32 to vector<16x128xi32>
    %39 = arith.cmpi eq, %4, %38 : vector<16x128xi32>
    %40 = arith.select %39, %0, %37 : vector<16x128xi1>, vector<16x128xf32>
    %41 = vector.extract_strided_slice %5 {offsets = [1, 0], sizes = [1, 128], strides = [1, 1]} : vector<9x128xf32> to vector<1x128xf32>
    %42 = vector.broadcast %41 : vector<1x128xf32> to vector<16x128xf32>
    %43 = arith.mulf %40, %42 : vector<16x128xf32>
    %44 = arith.addf %32, %43 : vector<16x128xf32>
    %45 = vector.extract_strided_slice %5 {offsets = [4, 0], sizes = [1, 128], strides = [1, 1]} : vector<9x128xf32> to vector<1x128xf32>
    %46 = vector.broadcast %45 : vector<1x128xf32> to vector<16x128xf32>
    %47 = arith.mulf %0, %46 : vector<16x128xf32>
    %48 = arith.addf %44, %47 : vector<16x128xf32>
    %49 = vector.extract_strided_slice %5 {offsets = [7, 0], sizes = [1, 128], strides = [1, 1]} : vector<9x128xf32> to vector<1x128xf32>
    %50 = vector.broadcast %49 : vector<1x128xf32> to vector<16x128xf32>
    %51 = arith.mulf %36, %50 : vector<16x128xf32>
    %52 = arith.addf %48, %51 : vector<16x128xf32>
    %c127_i32_12 = arith.constant 127 : i32
    %53 = tpu.dynamic_rotate %9 by %c127_i32_12 dim 1 : vector<16x128xf32>, i32 -> vector<16x128xf32>
    %c15_i32_13 = arith.constant 15 : i32
    %54 = vector.broadcast %c15_i32_13 : i32 to vector<16x128xi32>
    %55 = arith.cmpi eq, %4, %54 : vector<16x128xi32>
    %56 = arith.select %55, %9, %53 : vector<16x128xi1>, vector<16x128xf32>
    %c1_i32_14 = arith.constant 1 : i32
    %57 = tpu.dynamic_rotate %9 by %c1_i32_14 dim 1 : vector<16x128xf32>, i32 -> vector<16x128xf32>
    %c0_i32_15 = arith.constant 0 : i32
    %58 = vector.broadcast %c0_i32_15 : i32 to vector<16x128xi32>
    %59 = arith.cmpi eq, %4, %58 : vector<16x128xi32>
    %60 = arith.select %59, %9, %57 : vector<16x128xi1>, vector<16x128xf32>
    %61 = vector.extract_strided_slice %5 {offsets = [2, 0], sizes = [1, 128], strides = [1, 1]} : vector<9x128xf32> to vector<1x128xf32>
    %62 = vector.broadcast %61 : vector<1x128xf32> to vector<16x128xf32>
    %63 = arith.mulf %60, %62 : vector<16x128xf32>
    %64 = arith.addf %52, %63 : vector<16x128xf32>
    %65 = vector.extract_strided_slice %5 {offsets = [5, 0], sizes = [1, 128], strides = [1, 1]} : vector<9x128xf32> to vector<1x128xf32>
    %66 = vector.broadcast %65 : vector<1x128xf32> to vector<16x128xf32>
    %67 = arith.mulf %9, %66 : vector<16x128xf32>
    %68 = arith.addf %64, %67 : vector<16x128xf32>
    %69 = vector.extract_strided_slice %5 {offsets = [8, 0], sizes = [1, 128], strides = [1, 1]} : vector<9x128xf32> to vector<1x128xf32>
    %70 = vector.broadcast %69 : vector<1x128xf32> to vector<16x128xf32>
    %71 = arith.mulf %56, %70 : vector<16x128xf32>
    %72 = arith.addf %68, %71 : vector<16x128xf32>
    %cst = arith.constant dense<0.000000e+00> : vector<128xf32>
    %73 = vector.multi_reduction <add>, %72, %cst [0] : vector<16x128xf32> to vector<128xf32>
    %74 = vector.shape_cast %73 : vector<128xf32> to vector<1x128xf32>
    %75 = arith.mulf %72, %72 : vector<16x128xf32>
    %cst_16 = arith.constant dense<0.000000e+00> : vector<128xf32>
    %76 = vector.multi_reduction <add>, %75, %cst_16 [0] : vector<16x128xf32> to vector<128xf32>
    %77 = vector.shape_cast %76 : vector<128xf32> to vector<1x128xf32>
    %78 = tpu.concatenate %74, %77 in 0 : vector<1x128xf32>, vector<1x128xf32> -> vector<2x128xf32>
    %c0_17 = arith.constant 0 : index
    %c0_18 = arith.constant 0 : index
    %79 = vector.load %arg4[%c0_17, %c0_18] : memref<128x128xf32, #tpu.memory_space<vmem>>, vector<128x128xf32>
    %cst_19 = arith.constant dense<0.000000e+00> : vector<2x128xf32>
    %80 = tpu.matmul %78, %79, %cst_19 {dimension_numbers = #tpu.dot_dimension_numbers<[1], [0], [0], [1], [0, 0, 1, 1], [], []>} : vector<2x128xf32>, vector<128x128xf32>, vector<2x128xf32> -> vector<2x128xf32>
    %81 = vector.extract_strided_slice %80 {offsets = [0, 0], sizes = [1, 128], strides = [1, 1]} : vector<2x128xf32> to vector<1x128xf32>
    %cst_20 = arith.constant 0.001953125 : f32
    %82 = vector.broadcast %cst_20 : f32 to vector<1x128xf32>
    %83 = arith.mulf %81, %82 : vector<1x128xf32>
    %84 = vector.extract_strided_slice %80 {offsets = [1, 0], sizes = [1, 128], strides = [1, 1]} : vector<2x128xf32> to vector<1x128xf32>
    %cst_21 = arith.constant 0.001953125 : f32
    %85 = vector.broadcast %cst_21 : f32 to vector<1x128xf32>
    %86 = arith.mulf %84, %85 : vector<1x128xf32>
    %87 = arith.mulf %83, %83 : vector<1x128xf32>
    %88 = arith.subf %86, %87 : vector<1x128xf32>
    %c0_22 = arith.constant 0 : index
    %c0_23 = arith.constant 0 : index
    %89 = vector.load %arg2[%c0_22, %c0_23] : memref<1x128xf32, #tpu.memory_space<vmem>>, vector<1x128xf32>
    %cst_24 = arith.constant 9.99999974E-6 : f32
    %90 = vector.broadcast %cst_24 : f32 to vector<1x128xf32>
    %91 = arith.addf %88, %90 : vector<1x128xf32>
    %92 = math.rsqrt %91 : vector<1x128xf32>
    %93 = arith.mulf %89, %92 : vector<1x128xf32>
    %c0_25 = arith.constant 0 : index
    %c0_26 = arith.constant 0 : index
    %94 = vector.load %arg3[%c0_25, %c0_26] : memref<1x128xf32, #tpu.memory_space<vmem>>, vector<1x128xf32>
    %95 = arith.mulf %83, %93 : vector<1x128xf32>
    %96 = arith.subf %94, %95 : vector<1x128xf32>
    %97 = vector.broadcast %93 : vector<1x128xf32> to vector<16x128xf32>
    %98 = arith.mulf %72, %97 : vector<16x128xf32>
    %99 = vector.broadcast %96 : vector<1x128xf32> to vector<16x128xf32>
    %100 = arith.addf %98, %99 : vector<16x128xf32>
    %cst_27 = arith.constant 0.000000e+00 : f32
    %101 = vector.broadcast %cst_27 : f32 to vector<16x128xf32>
    %102 = arith.maximumf %100, %101 : vector<16x128xf32>
    %c0_28 = arith.constant 0 : index
    %c0_29 = arith.constant 0 : index
    %103 = vector.load %arg5[%c0_28, %c0_29] : memref<128x64xf32, #tpu.memory_space<vmem>>, vector<128x64xf32>
    %cst_30 = arith.constant dense<0.000000e+00> : vector<16x64xf32>
    %104 = tpu.matmul %102, %103, %cst_30 {dimension_numbers = #tpu.dot_dimension_numbers<[1], [0], [0], [1], [0, 0, 1, 1], [], []>} : vector<16x128xf32>, vector<128x64xf32>, vector<16x64xf32> -> vector<16x64xf32>
    %cst_31 = arith.constant dense<0.000000e+00> : vector<64xf32>
    %105 = vector.multi_reduction <add>, %104, %cst_31 [0] : vector<16x64xf32> to vector<64xf32>
    %106 = vector.shape_cast %105 : vector<64xf32> to vector<1x64xf32>
    %107 = arith.mulf %104, %104 : vector<16x64xf32>
    %cst_32 = arith.constant dense<0.000000e+00> : vector<64xf32>
    %108 = vector.multi_reduction <add>, %107, %cst_32 [0] : vector<16x64xf32> to vector<64xf32>
    %109 = vector.shape_cast %108 : vector<64xf32> to vector<1x64xf32>
    %110 = tpu.concatenate %106, %109 in 0 : vector<1x64xf32>, vector<1x64xf32> -> vector<2x64xf32>
    %c0_33 = arith.constant 0 : index
    %c0_34 = arith.constant 0 : index
    %111 = vector.load %arg8[%c0_33, %c0_34] : memref<64x64xf32, #tpu.memory_space<vmem>>, vector<64x64xf32>
    %cst_35 = arith.constant dense<0.000000e+00> : vector<2x64xf32>
    %112 = tpu.matmul %110, %111, %cst_35 {dimension_numbers = #tpu.dot_dimension_numbers<[1], [0], [0], [1], [0, 0, 1, 1], [], []>} : vector<2x64xf32>, vector<64x64xf32>, vector<2x64xf32> -> vector<2x64xf32>
    %113 = vector.extract_strided_slice %112 {offsets = [0, 0], sizes = [1, 64], strides = [1, 1]} : vector<2x64xf32> to vector<1x64xf32>
    %cst_36 = arith.constant 0.001953125 : f32
    %114 = vector.broadcast %cst_36 : f32 to vector<1x64xf32>
    %115 = arith.mulf %113, %114 : vector<1x64xf32>
    %116 = vector.extract_strided_slice %112 {offsets = [1, 0], sizes = [1, 64], strides = [1, 1]} : vector<2x64xf32> to vector<1x64xf32>
    %cst_37 = arith.constant 0.001953125 : f32
    %117 = vector.broadcast %cst_37 : f32 to vector<1x64xf32>
    %118 = arith.mulf %116, %117 : vector<1x64xf32>
    %119 = arith.mulf %115, %115 : vector<1x64xf32>
    %120 = arith.subf %118, %119 : vector<1x64xf32>
    %c0_38 = arith.constant 0 : index
    %c0_39 = arith.constant 0 : index
    %121 = vector.load %arg6[%c0_38, %c0_39] : memref<1x64xf32, #tpu.memory_space<vmem>>, vector<1x64xf32>
    %cst_40 = arith.constant 9.99999974E-6 : f32
    %122 = vector.broadcast %cst_40 : f32 to vector<1x64xf32>
    %123 = arith.addf %120, %122 : vector<1x64xf32>
    %124 = math.rsqrt %123 : vector<1x64xf32>
    %125 = arith.mulf %121, %124 : vector<1x64xf32>
    %c0_41 = arith.constant 0 : index
    %c0_42 = arith.constant 0 : index
    %126 = vector.load %arg7[%c0_41, %c0_42] : memref<1x64xf32, #tpu.memory_space<vmem>>, vector<1x64xf32>
    %127 = arith.mulf %115, %125 : vector<1x64xf32>
    %128 = arith.subf %126, %127 : vector<1x64xf32>
    %129 = vector.broadcast %125 : vector<1x64xf32> to vector<16x64xf32>
    %130 = arith.mulf %104, %129 : vector<16x64xf32>
    %131 = vector.broadcast %128 : vector<1x64xf32> to vector<16x64xf32>
    %132 = arith.addf %130, %131 : vector<16x64xf32>
    %cst_43 = arith.constant 0.000000e+00 : f32
    %133 = vector.broadcast %cst_43 : f32 to vector<16x64xf32>
    %134 = arith.maximumf %132, %133 : vector<16x64xf32>
    %135 = tpu.iota {dimensions = array<i32: 0>} : vector<16x64xi32>
    %136 = tpu.iota {dimensions = array<i32: 1>} : vector<16x64xi32>
    %c15_i32_44 = arith.constant 15 : i32
    %137 = vector.broadcast %c15_i32_44 : i32 to vector<16x64xi32>
    %138 = arith.andi %136, %137 : vector<16x64xi32>
    %c0_45 = arith.constant 0 : index
    %c0_46 = arith.constant 0 : index
    %139 = vector.load %arg9[%c0_45, %c0_46] : memref<9x64xf32, #tpu.memory_space<vmem>>, vector<9x64xf32>
    %c15_i32_47 = arith.constant 15 : i32
    %140 = tpu.dynamic_rotate %134 by %c15_i32_47 dim 0 : vector<16x64xf32>, i32 -> vector<16x64xf32>
    %c15_i32_48 = arith.constant 15 : i32
    %141 = vector.broadcast %c15_i32_48 : i32 to vector<16x64xi32>
    %142 = arith.cmpi eq, %135, %141 : vector<16x64xi32>
    %143 = arith.select %142, %134, %140 : vector<16x64xi1>, vector<16x64xf32>
    %c1_i32_49 = arith.constant 1 : i32
    %144 = tpu.dynamic_rotate %134 by %c1_i32_49 dim 0 : vector<16x64xf32>, i32 -> vector<16x64xf32>
    %c0_i32_50 = arith.constant 0 : i32
    %145 = vector.broadcast %c0_i32_50 : i32 to vector<16x64xi32>
    %146 = arith.cmpi eq, %135, %145 : vector<16x64xi32>
    %147 = arith.select %146, %134, %144 : vector<16x64xi1>, vector<16x64xf32>
    %c63_i32 = arith.constant 63 : i32
    %148 = tpu.dynamic_rotate %147 by %c63_i32 dim 1 : vector<16x64xf32>, i32 -> vector<16x64xf32>
    %c15_i32_51 = arith.constant 15 : i32
    %149 = vector.broadcast %c15_i32_51 : i32 to vector<16x64xi32>
    %150 = arith.cmpi eq, %138, %149 : vector<16x64xi32>
    %151 = arith.select %150, %147, %148 : vector<16x64xi1>, vector<16x64xf32>
    %c1_i32_52 = arith.constant 1 : i32
    %152 = tpu.dynamic_rotate %147 by %c1_i32_52 dim 1 : vector<16x64xf32>, i32 -> vector<16x64xf32>
    %c0_i32_53 = arith.constant 0 : i32
    %153 = vector.broadcast %c0_i32_53 : i32 to vector<16x64xi32>
    %154 = arith.cmpi eq, %138, %153 : vector<16x64xi32>
    %155 = arith.select %154, %147, %152 : vector<16x64xi1>, vector<16x64xf32>
    %156 = vector.extract_strided_slice %139 {offsets = [0, 0], sizes = [1, 64], strides = [1, 1]} : vector<9x64xf32> to vector<1x64xf32>
    %157 = vector.broadcast %156 : vector<1x64xf32> to vector<16x64xf32>
    %158 = arith.mulf %155, %157 : vector<16x64xf32>
    %159 = vector.extract_strided_slice %139 {offsets = [3, 0], sizes = [1, 64], strides = [1, 1]} : vector<9x64xf32> to vector<1x64xf32>
    %160 = vector.broadcast %159 : vector<1x64xf32> to vector<16x64xf32>
    %161 = arith.mulf %147, %160 : vector<16x64xf32>
    %162 = arith.addf %158, %161 : vector<16x64xf32>
    %163 = vector.extract_strided_slice %139 {offsets = [6, 0], sizes = [1, 64], strides = [1, 1]} : vector<9x64xf32> to vector<1x64xf32>
    %164 = vector.broadcast %163 : vector<1x64xf32> to vector<16x64xf32>
    %165 = arith.mulf %151, %164 : vector<16x64xf32>
    %166 = arith.addf %162, %165 : vector<16x64xf32>
    %c63_i32_54 = arith.constant 63 : i32
    %167 = tpu.dynamic_rotate %134 by %c63_i32_54 dim 1 : vector<16x64xf32>, i32 -> vector<16x64xf32>
    %c15_i32_55 = arith.constant 15 : i32
    %168 = vector.broadcast %c15_i32_55 : i32 to vector<16x64xi32>
    %169 = arith.cmpi eq, %138, %168 : vector<16x64xi32>
    %170 = arith.select %169, %134, %167 : vector<16x64xi1>, vector<16x64xf32>
    %c1_i32_56 = arith.constant 1 : i32
    %171 = tpu.dynamic_rotate %134 by %c1_i32_56 dim 1 : vector<16x64xf32>, i32 -> vector<16x64xf32>
    %c0_i32_57 = arith.constant 0 : i32
    %172 = vector.broadcast %c0_i32_57 : i32 to vector<16x64xi32>
    %173 = arith.cmpi eq, %138, %172 : vector<16x64xi32>
    %174 = arith.select %173, %134, %171 : vector<16x64xi1>, vector<16x64xf32>
    %175 = vector.extract_strided_slice %139 {offsets = [1, 0], sizes = [1, 64], strides = [1, 1]} : vector<9x64xf32> to vector<1x64xf32>
    %176 = vector.broadcast %175 : vector<1x64xf32> to vector<16x64xf32>
    %177 = arith.mulf %174, %176 : vector<16x64xf32>
    %178 = arith.addf %166, %177 : vector<16x64xf32>
    %179 = vector.extract_strided_slice %139 {offsets = [4, 0], sizes = [1, 64], strides = [1, 1]} : vector<9x64xf32> to vector<1x64xf32>
    %180 = vector.broadcast %179 : vector<1x64xf32> to vector<16x64xf32>
    %181 = arith.mulf %134, %180 : vector<16x64xf32>
    %182 = arith.addf %178, %181 : vector<16x64xf32>
    %183 = vector.extract_strided_slice %139 {offsets = [7, 0], sizes = [1, 64], strides = [1, 1]} : vector<9x64xf32> to vector<1x64xf32>
    %184 = vector.broadcast %183 : vector<1x64xf32> to vector<16x64xf32>
    %185 = arith.mulf %170, %184 : vector<16x64xf32>
    %186 = arith.addf %182, %185 : vector<16x64xf32>
    %c63_i32_58 = arith.constant 63 : i32
    %187 = tpu.dynamic_rotate %143 by %c63_i32_58 dim 1 : vector<16x64xf32>, i32 -> vector<16x64xf32>
    %c15_i32_59 = arith.constant 15 : i32
    %188 = vector.broadcast %c15_i32_59 : i32 to vector<16x64xi32>
    %189 = arith.cmpi eq, %138, %188 : vector<16x64xi32>
    %190 = arith.select %189, %143, %187 : vector<16x64xi1>, vector<16x64xf32>
    %c1_i32_60 = arith.constant 1 : i32
    %191 = tpu.dynamic_rotate %143 by %c1_i32_60 dim 1 : vector<16x64xf32>, i32 -> vector<16x64xf32>
    %c0_i32_61 = arith.constant 0 : i32
    %192 = vector.broadcast %c0_i32_61 : i32 to vector<16x64xi32>
    %193 = arith.cmpi eq, %138, %192 : vector<16x64xi32>
    %194 = arith.select %193, %143, %191 : vector<16x64xi1>, vector<16x64xf32>
    %195 = vector.extract_strided_slice %139 {offsets = [2, 0], sizes = [1, 64], strides = [1, 1]} : vector<9x64xf32> to vector<1x64xf32>
    %196 = vector.broadcast %195 : vector<1x64xf32> to vector<16x64xf32>
    %197 = arith.mulf %194, %196 : vector<16x64xf32>
    %198 = arith.addf %186, %197 : vector<16x64xf32>
    %199 = vector.extract_strided_slice %139 {offsets = [5, 0], sizes = [1, 64], strides = [1, 1]} : vector<9x64xf32> to vector<1x64xf32>
    %200 = vector.broadcast %199 : vector<1x64xf32> to vector<16x64xf32>
    %201 = arith.mulf %143, %200 : vector<16x64xf32>
    %202 = arith.addf %198, %201 : vector<16x64xf32>
    %203 = vector.extract_strided_slice %139 {offsets = [8, 0], sizes = [1, 64], strides = [1, 1]} : vector<9x64xf32> to vector<1x64xf32>
    %204 = vector.broadcast %203 : vector<1x64xf32> to vector<16x64xf32>
    %205 = arith.mulf %190, %204 : vector<16x64xf32>
    %206 = arith.addf %202, %205 : vector<16x64xf32>
    %cst_62 = arith.constant dense<0.000000e+00> : vector<64xf32>
    %207 = vector.multi_reduction <add>, %206, %cst_62 [0] : vector<16x64xf32> to vector<64xf32>
    %208 = vector.shape_cast %207 : vector<64xf32> to vector<1x64xf32>
    %209 = arith.mulf %206, %206 : vector<16x64xf32>
    %cst_63 = arith.constant dense<0.000000e+00> : vector<64xf32>
    %210 = vector.multi_reduction <add>, %209, %cst_63 [0] : vector<16x64xf32> to vector<64xf32>
    %211 = vector.shape_cast %210 : vector<64xf32> to vector<1x64xf32>
    %212 = tpu.concatenate %208, %211 in 0 : vector<1x64xf32>, vector<1x64xf32> -> vector<2x64xf32>
    %c0_64 = arith.constant 0 : index
    %c0_65 = arith.constant 0 : index
    %213 = vector.load %arg12[%c0_64, %c0_65] : memref<64x64xf32, #tpu.memory_space<vmem>>, vector<64x64xf32>
    %cst_66 = arith.constant dense<0.000000e+00> : vector<2x64xf32>
    %214 = tpu.matmul %212, %213, %cst_66 {dimension_numbers = #tpu.dot_dimension_numbers<[1], [0], [0], [1], [0, 0, 1, 1], [], []>} : vector<2x64xf32>, vector<64x64xf32>, vector<2x64xf32> -> vector<2x64xf32>
    %215 = vector.extract_strided_slice %214 {offsets = [0, 0], sizes = [1, 64], strides = [1, 1]} : vector<2x64xf32> to vector<1x64xf32>
    %cst_67 = arith.constant 0.001953125 : f32
    %216 = vector.broadcast %cst_67 : f32 to vector<1x64xf32>
    %217 = arith.mulf %215, %216 : vector<1x64xf32>
    %218 = vector.extract_strided_slice %214 {offsets = [1, 0], sizes = [1, 64], strides = [1, 1]} : vector<2x64xf32> to vector<1x64xf32>
    %cst_68 = arith.constant 0.001953125 : f32
    %219 = vector.broadcast %cst_68 : f32 to vector<1x64xf32>
    %220 = arith.mulf %218, %219 : vector<1x64xf32>
    %221 = arith.mulf %217, %217 : vector<1x64xf32>
    %222 = arith.subf %220, %221 : vector<1x64xf32>
    %c0_69 = arith.constant 0 : index
    %c0_70 = arith.constant 0 : index
    %223 = vector.load %arg10[%c0_69, %c0_70] : memref<1x64xf32, #tpu.memory_space<vmem>>, vector<1x64xf32>
    %cst_71 = arith.constant 9.99999974E-6 : f32
    %224 = vector.broadcast %cst_71 : f32 to vector<1x64xf32>
    %225 = arith.addf %222, %224 : vector<1x64xf32>
    %226 = math.rsqrt %225 : vector<1x64xf32>
    %227 = arith.mulf %223, %226 : vector<1x64xf32>
    %c0_72 = arith.constant 0 : index
    %c0_73 = arith.constant 0 : index
    %228 = vector.load %arg11[%c0_72, %c0_73] : memref<1x64xf32, #tpu.memory_space<vmem>>, vector<1x64xf32>
    %229 = arith.mulf %217, %227 : vector<1x64xf32>
    %230 = arith.subf %228, %229 : vector<1x64xf32>
    %231 = vector.broadcast %227 : vector<1x64xf32> to vector<16x64xf32>
    %232 = arith.mulf %206, %231 : vector<16x64xf32>
    %233 = vector.broadcast %230 : vector<1x64xf32> to vector<16x64xf32>
    %234 = arith.addf %232, %233 : vector<16x64xf32>
    %cst_74 = arith.constant 0.000000e+00 : f32
    %235 = vector.broadcast %cst_74 : f32 to vector<16x64xf32>
    %236 = arith.maximumf %234, %235 : vector<16x64xf32>
    %c0_75 = arith.constant 0 : index
    %c0_76 = arith.constant 0 : index
    %237 = vector.load %arg13[%c0_75, %c0_76] : memref<64x32xf32, #tpu.memory_space<vmem>>, vector<64x32xf32>
    %cst_77 = arith.constant dense<0.000000e+00> : vector<16x32xf32>
    %238 = tpu.matmul %236, %237, %cst_77 {dimension_numbers = #tpu.dot_dimension_numbers<[1], [0], [0], [1], [0, 0, 1, 1], [], []>} : vector<16x64xf32>, vector<64x32xf32>, vector<16x32xf32> -> vector<16x32xf32>
    %cst_78 = arith.constant dense<0.000000e+00> : vector<32xf32>
    %239 = vector.multi_reduction <add>, %238, %cst_78 [0] : vector<16x32xf32> to vector<32xf32>
    %240 = vector.shape_cast %239 : vector<32xf32> to vector<1x32xf32>
    %241 = arith.mulf %238, %238 : vector<16x32xf32>
    %cst_79 = arith.constant dense<0.000000e+00> : vector<32xf32>
    %242 = vector.multi_reduction <add>, %241, %cst_79 [0] : vector<16x32xf32> to vector<32xf32>
    %243 = vector.shape_cast %242 : vector<32xf32> to vector<1x32xf32>
    %244 = tpu.concatenate %240, %243 in 0 : vector<1x32xf32>, vector<1x32xf32> -> vector<2x32xf32>
    %c0_80 = arith.constant 0 : index
    %c0_81 = arith.constant 0 : index
    %245 = vector.load %arg16[%c0_80, %c0_81] : memref<32x32xf32, #tpu.memory_space<vmem>>, vector<32x32xf32>
    %cst_82 = arith.constant dense<0.000000e+00> : vector<2x32xf32>
    %246 = tpu.matmul %244, %245, %cst_82 {dimension_numbers = #tpu.dot_dimension_numbers<[1], [0], [0], [1], [0, 0, 1, 1], [], []>} : vector<2x32xf32>, vector<32x32xf32>, vector<2x32xf32> -> vector<2x32xf32>
    %247 = vector.extract_strided_slice %246 {offsets = [0, 0], sizes = [1, 32], strides = [1, 1]} : vector<2x32xf32> to vector<1x32xf32>
    %cst_83 = arith.constant 0.001953125 : f32
    %248 = vector.broadcast %cst_83 : f32 to vector<1x32xf32>
    %249 = arith.mulf %247, %248 : vector<1x32xf32>
    %250 = vector.extract_strided_slice %246 {offsets = [1, 0], sizes = [1, 32], strides = [1, 1]} : vector<2x32xf32> to vector<1x32xf32>
    %cst_84 = arith.constant 0.001953125 : f32
    %251 = vector.broadcast %cst_84 : f32 to vector<1x32xf32>
    %252 = arith.mulf %250, %251 : vector<1x32xf32>
    %253 = arith.mulf %249, %249 : vector<1x32xf32>
    %254 = arith.subf %252, %253 : vector<1x32xf32>
    %c0_85 = arith.constant 0 : index
    %c0_86 = arith.constant 0 : index
    %255 = vector.load %arg14[%c0_85, %c0_86] : memref<1x32xf32, #tpu.memory_space<vmem>>, vector<1x32xf32>
    %cst_87 = arith.constant 9.99999974E-6 : f32
    %256 = vector.broadcast %cst_87 : f32 to vector<1x32xf32>
    %257 = arith.addf %254, %256 : vector<1x32xf32>
    %258 = math.rsqrt %257 : vector<1x32xf32>
    %259 = arith.mulf %255, %258 : vector<1x32xf32>
    %c0_88 = arith.constant 0 : index
    %c0_89 = arith.constant 0 : index
    %260 = vector.load %arg15[%c0_88, %c0_89] : memref<1x32xf32, #tpu.memory_space<vmem>>, vector<1x32xf32>
    %261 = arith.mulf %249, %259 : vector<1x32xf32>
    %262 = arith.subf %260, %261 : vector<1x32xf32>
    %263 = vector.broadcast %259 : vector<1x32xf32> to vector<16x32xf32>
    %264 = arith.mulf %238, %263 : vector<16x32xf32>
    %265 = vector.broadcast %262 : vector<1x32xf32> to vector<16x32xf32>
    %266 = arith.addf %264, %265 : vector<16x32xf32>
    %cst_90 = arith.constant 0.000000e+00 : f32
    %267 = vector.broadcast %cst_90 : f32 to vector<16x32xf32>
    %268 = arith.maximumf %266, %267 : vector<16x32xf32>
    %269 = tpu.iota {dimensions = array<i32: 0>} : vector<16x32xi32>
    %c15_i32_91 = arith.constant 15 : i32
    %270 = tpu.dynamic_rotate %268 by %c15_i32_91 dim 0 : vector<16x32xf32>, i32 -> vector<16x32xf32>
    %c15_i32_92 = arith.constant 15 : i32
    %271 = vector.broadcast %c15_i32_92 : i32 to vector<16x32xi32>
    %272 = arith.cmpi eq, %269, %271 : vector<16x32xi32>
    %273 = arith.select %272, %268, %270 : vector<16x32xi1>, vector<16x32xf32>
    %c1_i32_93 = arith.constant 1 : i32
    %274 = tpu.dynamic_rotate %268 by %c1_i32_93 dim 0 : vector<16x32xf32>, i32 -> vector<16x32xf32>
    %c0_i32_94 = arith.constant 0 : i32
    %275 = vector.broadcast %c0_i32_94 : i32 to vector<16x32xi32>
    %276 = arith.cmpi eq, %269, %275 : vector<16x32xi32>
    %277 = arith.select %276, %268, %274 : vector<16x32xi1>, vector<16x32xf32>
    %278 = vector.extract_strided_slice %277 {offsets = [0, 0], sizes = [16, 16], strides = [1, 1]} : vector<16x32xf32> to vector<16x16xf32>
    %279 = vector.extract_strided_slice %268 {offsets = [0, 0], sizes = [16, 16], strides = [1, 1]} : vector<16x32xf32> to vector<16x16xf32>
    %280 = vector.extract_strided_slice %273 {offsets = [0, 0], sizes = [16, 16], strides = [1, 1]} : vector<16x32xf32> to vector<16x16xf32>
    %281 = tpu.concatenate %278, %279, %280 in 1 : vector<16x16xf32>, vector<16x16xf32>, vector<16x16xf32> -> vector<16x48xf32>
    %282 = vector.extract_strided_slice %277 {offsets = [0, 16], sizes = [16, 16], strides = [1, 1]} : vector<16x32xf32> to vector<16x16xf32>
    %283 = vector.extract_strided_slice %268 {offsets = [0, 16], sizes = [16, 16], strides = [1, 1]} : vector<16x32xf32> to vector<16x16xf32>
    %284 = vector.extract_strided_slice %273 {offsets = [0, 16], sizes = [16, 16], strides = [1, 1]} : vector<16x32xf32> to vector<16x16xf32>
    %285 = tpu.concatenate %282, %283, %284 in 1 : vector<16x16xf32>, vector<16x16xf32>, vector<16x16xf32> -> vector<16x48xf32>
    %286 = tpu.concatenate %281, %285 in 0 : vector<16x48xf32>, vector<16x48xf32> -> vector<32x48xf32>
    %c0_95 = arith.constant 0 : index
    %c0_96 = arith.constant 0 : index
    %287 = vector.load %arg17[%c0_95, %c0_96] : memref<48x32xf32, #tpu.memory_space<vmem>>, vector<48x32xf32>
    %cst_97 = arith.constant dense<0.000000e+00> : vector<32x32xf32>
    %288 = tpu.matmul %286, %287, %cst_97 {dimension_numbers = #tpu.dot_dimension_numbers<[1], [0], [0], [1], [0, 0, 1, 1], [], []>} : vector<32x48xf32>, vector<48x32xf32>, vector<32x32xf32> -> vector<32x32xf32>
    %cst_98 = arith.constant dense<0.000000e+00> : vector<32xf32>
    %289 = vector.multi_reduction <add>, %288, %cst_98 [1] : vector<32x32xf32> to vector<32xf32>
    %290 = vector.shape_cast %289 : vector<32xf32> to vector<32x1xf32>
    %cst_99 = arith.constant 3.200000e+01 : f32
    %291 = vector.broadcast %cst_99 : f32 to vector<32x1xf32>
    %292 = arith.divf %290, %291 : vector<32x1xf32>
    %293 = vector.broadcast %292 : vector<32x1xf32> to vector<32x32xf32>
    %294 = arith.subf %288, %293 : vector<32x32xf32>
    %295 = arith.mulf %294, %294 : vector<32x32xf32>
    %cst_100 = arith.constant dense<0.000000e+00> : vector<32xf32>
    %296 = vector.multi_reduction <add>, %295, %cst_100 [1] : vector<32x32xf32> to vector<32xf32>
    %297 = vector.shape_cast %296 : vector<32xf32> to vector<32x1xf32>
    %cst_101 = arith.constant 3.200000e+01 : f32
    %298 = vector.broadcast %cst_101 : f32 to vector<32x1xf32>
    %299 = arith.divf %297, %298 : vector<32x1xf32>
    %300 = vector.broadcast %292 : vector<32x1xf32> to vector<32x32xf32>
    %301 = arith.subf %288, %300 : vector<32x32xf32>
    %cst_102 = arith.constant 9.99999974E-6 : f32
    %302 = vector.broadcast %cst_102 : f32 to vector<32x1xf32>
    %303 = arith.addf %299, %302 : vector<32x1xf32>
    %304 = math.rsqrt %303 : vector<32x1xf32>
    %305 = vector.broadcast %304 : vector<32x1xf32> to vector<32x32xf32>
    %306 = arith.mulf %301, %305 : vector<32x32xf32>
    %c0_103 = arith.constant 0 : index
    %c0_104 = arith.constant 0 : index
    %307 = vector.load %arg18[%c0_103, %c0_104] : memref<1x32xf32, #tpu.memory_space<vmem>>, vector<1x32xf32>
    %308 = vector.broadcast %307 : vector<1x32xf32> to vector<32x32xf32>
    %309 = arith.mulf %306, %308 : vector<32x32xf32>
    %c0_105 = arith.constant 0 : index
    %c0_106 = arith.constant 0 : index
    %310 = vector.load %arg19[%c0_105, %c0_106] : memref<1x32xf32, #tpu.memory_space<vmem>>, vector<1x32xf32>
    %311 = vector.broadcast %310 : vector<1x32xf32> to vector<32x32xf32>
    %312 = arith.addf %309, %311 : vector<32x32xf32>
    %cst_107 = arith.constant 0.000000e+00 : f32
    %313 = vector.broadcast %cst_107 : f32 to vector<32x32xf32>
    %314 = arith.maximumf %312, %313 : vector<32x32xf32>
    %c0_108 = arith.constant 0 : index
    %c0_109 = arith.constant 0 : index
    %315 = vector.load %arg20[%c0_108, %c0_109] : memref<32x32xf32, #tpu.memory_space<vmem>>, vector<32x32xf32>
    tpu.vector_store %arg20[%c0_108, %c0_109], %314 {strides = array<i32>} : memref<32x32xf32, #tpu.memory_space<vmem>>, vector<32x32xf32>,
    return
  }
}

</mosaic_0001>

<llo_original>
// kernel: _lambda_.1
$region0: #{_lambda_.1}
  #allocation0 [shape = 'u32[]', space=smem, size = 0x4, offset = 0x4, fixed_abs, tag = 'smem constant byte address 0x4 - core index']
  #allocation1 [shape = 'u32[72,128]{1,0:T(1,128)}', space=vmem, size = 0x9000, scoped, tag = 'internal scratch']
  %s0 = inlined_call_operand.vmem [shape: f32[16,128], index: 0, kind: input, shape index: {}]
  %s1 = inlined_call_operand.vmem [shape: f32[9,128], index: 1, kind: input, shape index: {}]
  %s2 = inlined_call_operand.vmem [shape: f32[1,128], index: 2, kind: input, shape index: {}]
  %s3 = inlined_call_operand.vmem [shape: f32[1,128], index: 3, kind: input, shape index: {}]
  %s4 = inlined_call_operand.vmem [shape: f32[128,128], index: 4, kind: input, shape index: {}]
  %s5 = inlined_call_operand.vmem [shape: f32[128,64], index: 5, kind: input, shape index: {}]
  %s6 = inlined_call_operand.vmem [shape: f32[1,64], index: 6, kind: input, shape index: {}]
  %s7 = inlined_call_operand.vmem [shape: f32[1,64], index: 7, kind: input, shape index: {}]
  %s8 = inlined_call_operand.vmem [shape: f32[64,64], index: 8, kind: input, shape index: {}, may-alias: {8,12}]
  %s9 = inlined_call_operand.vmem [shape: f32[9,64], index: 9, kind: input, shape index: {}]
  %s10 = inlined_call_operand.vmem [shape: f32[1,64], index: 10, kind: input, shape index: {}]
  %s11 = inlined_call_operand.vmem [shape: f32[1,64], index: 11, kind: input, shape index: {}]
  %s12 = inlined_call_operand.vmem [shape: f32[64,64], index: 12, kind: input, shape index: {}, may-alias: {8,12}]
  %s13 = inlined_call_operand.vmem [shape: f32[64,32], index: 13, kind: input, shape index: {}]
  %s14 = inlined_call_operand.vmem [shape: f32[1,32], index: 14, kind: input, shape index: {}]
  %s15 = inlined_call_operand.vmem [shape: f32[1,32], index: 15, kind: input, shape index: {}]
  %s16 = inlined_call_operand.vmem [shape: f32[32,32], index: 16, kind: input, shape index: {}]
  %s17 = inlined_call_operand.vmem [shape: f32[48,32], index: 17, kind: input, shape index: {}]
  %s18 = inlined_call_operand.vmem [shape: f32[1,32], index: 18, kind: input, shape index: {}]
  %s19 = inlined_call_operand.vmem [shape: f32[1,32], index: 19, kind: input, shape index: {}]
  %s20 = inlined_call_operand.hbm [shape: f32[32,32], index: 20, kind: output, shape index: {}]
  %s21 = sld [smem:[#allocation0]]
  $region90: #{_lambda_.1} parent=0
    _
  %s23 = ssub.s32 1, %s21
  %s24 = scalar_select 0, %s23, %s21
  $region1: #{_lambda_.1} parent=0
    #allocation2 [shape = 'u8[16384]{0}', space=vmem, size = 0x4000, scoped, tag = 'output window, operand 0, single buffered']
    #allocation3 [shape = 's32[1]{0}', space=sflag, size = 0x4, scoped, tag = 'scoped memory for _lambda_.1']
    %25 = vsyncpa [#allocation3], 0
    // Predicated region
    $region2: #{_lambda_.1} parent=1 // pred_check
      _
    $region3: #{_lambda_.1} parent=1 // pred_check_branch
      %27 = sbr.rel (0) target = $region5
    $region4: #{_lambda_.1} parent=1 // pred_region
      _
    $region5: #{_lambda_.1} parent=1 // pred_fallthru
      _
    // Predicated region
    $region6: #{_lambda_.1} parent=1 // pred_check
      _
    $region7: #{_lambda_.1} parent=1 // pred_check_branch
      %29 = sbr.rel (0) target = $region9
    $region8: #{_lambda_.1} parent=1 // pred_region
      _
    $region9: #{_lambda_.1} parent=1 // pred_fallthru
      _
    // Predicated region
    $region10: #{_lambda_.1} parent=1 // pred_check
      _
    $region11: #{_lambda_.1} parent=1 // pred_check_branch
      %31 = sbr.rel (0) target = $region13
    $region12: #{_lambda_.1} parent=1 // pred_region
      _
    $region13: #{_lambda_.1} parent=1 // pred_fallthru
      _
    // Predicated region
    $region14: #{_lambda_.1} parent=1 // pred_check
      _
    $region15: #{_lambda_.1} parent=1 // pred_check_branch
      %33 = sbr.rel (0) target = $region17
    $region16: #{_lambda_.1} parent=1 // pred_region
      _
    $region17: #{_lambda_.1} parent=1 // pred_fallthru
      _
    // Predicated region
    $region18: #{_lambda_.1} parent=1 // pred_check
      _
    $region19: #{_lambda_.1} parent=1 // pred_check_branch
      %35 = sbr.rel (0) target = $region21
    $region20: #{_lambda_.1} parent=1 // pred_region
      _
    $region21: #{_lambda_.1} parent=1 // pred_fallthru
      _
    // Predicated region
    $region22: #{_lambda_.1} parent=1 // pred_check
      _
    $region23: #{_lambda_.1} parent=1 // pred_check_branch
      %37 = sbr.rel (0) target = $region25
    $region24: #{_lambda_.1} parent=1 // pred_region
      _
    $region25: #{_lambda_.1} parent=1 // pred_fallthru
      _
    // Predicated region
    $region26: #{_lambda_.1} parent=1 // pred_check
      _
    $region27: #{_lambda_.1} parent=1 // pred_check_branch
      %39 = sbr.rel (0) target = $region29
    $region28: #{_lambda_.1} parent=1 // pred_region
      _
    $region29: #{_lambda_.1} parent=1 // pred_fallthru
      _
    // Predicated region
    $region30: #{_lambda_.1} parent=1 // pred_check
      _
    $region31: #{_lambda_.1} parent=1 // pred_check_branch
      %41 = sbr.rel (0) target = $region33
    $region32: #{_lambda_.1} parent=1 // pred_region
      _
    $region33: #{_lambda_.1} parent=1 // pred_fallthru
      _
    // Predicated region
    $region34: #{_lambda_.1} parent=1 // pred_check
      _
    $region35: #{_lambda_.1} parent=1 // pred_check_branch
      %43 = sbr.rel (0) target = $region37
    $region36: #{_lambda_.1} parent=1 // pred_region
      _
    $region37: #{_lambda_.1} parent=1 // pred_fallthru
      _
    // Predicated region
    $region38: #{_lambda_.1} parent=1 // pred_check
      _
    $region39: #{_lambda_.1} parent=1 // pred_check_branch
      %45 = sbr.rel (0) target = $region41
    $region40: #{_lambda_.1} parent=1 // pred_region
      _
    $region41: #{_lambda_.1} parent=1 // pred_fallthru
      _
    // Predicated region
    $region42: #{_lambda_.1} parent=1 // pred_check
      _
    $region43: #{_lambda_.1} parent=1 // pred_check_branch
      %47 = sbr.rel (0) target = $region45
    $region44: #{_lambda_.1} parent=1 // pred_region
      _
    $region45: #{_lambda_.1} parent=1 // pred_fallthru
      _
    // Predicated region
    $region46: #{_lambda_.1} parent=1 // pred_check
      _
    $region47: #{_lambda_.1} parent=1 // pred_check_branch
      %49 = sbr.rel (0) target = $region49
    $region48: #{_lambda_.1} parent=1 // pred_region
      _
    $region49: #{_lambda_.1} parent=1 // pred_fallthru
      _
    // Predicated region
    $region50: #{_lambda_.1} parent=1 // pred_check
      _
    $region51: #{_lambda_.1} parent=1 // pred_check_branch
      %51 = sbr.rel (0) target = $region53
    $region52: #{_lambda_.1} parent=1 // pred_region
      _
    $region53: #{_lambda_.1} parent=1 // pred_fallthru
      _
    // Predicated region
    $region54: #{_lambda_.1} parent=1 // pred_check
      _
    $region55: #{_lambda_.1} parent=1 // pred_check_branch
      %53 = sbr.rel (0) target = $region57
    $region56: #{_lambda_.1} parent=1 // pred_region
      _
    $region57: #{_lambda_.1} parent=1 // pred_fallthru
      _
    // Predicated region
    $region58: #{_lambda_.1} parent=1 // pred_check
      _
    $region59: #{_lambda_.1} parent=1 // pred_check_branch
      %55 = sbr.rel (0) target = $region61
    $region60: #{_lambda_.1} parent=1 // pred_region
      _
    $region61: #{_lambda_.1} parent=1 // pred_fallthru
      _
    // Predicated region
    $region62: #{_lambda_.1} parent=1 // pred_check
      _
    $region63: #{_lambda_.1} parent=1 // pred_check_branch
      %57 = sbr.rel (0) target = $region65
    $region64: #{_lambda_.1} parent=1 // pred_region
      _
    $region65: #{_lambda_.1} parent=1 // pred_fallthru
      _
    // Predicated region
    $region66: #{_lambda_.1} parent=1 // pred_check
      _
    $region67: #{_lambda_.1} parent=1 // pred_check_branch
      %59 = sbr.rel (0) target = $region69
    $region68: #{_lambda_.1} parent=1 // pred_region
      _
    $region69: #{_lambda_.1} parent=1 // pred_fallthru
      _
    // Predicated region
    $region70: #{_lambda_.1} parent=1 // pred_check
      _
    $region71: #{_lambda_.1} parent=1 // pred_check_branch
      %61 = sbr.rel (0) target = $region73
    $region72: #{_lambda_.1} parent=1 // pred_region
      _
    $region73: #{_lambda_.1} parent=1 // pred_fallthru
      _
    // Predicated region
    $region74: #{_lambda_.1} parent=1 // pred_check
      _
    $region75: #{_lambda_.1} parent=1 // pred_check_branch
      %63 = sbr.rel (0) target = $region77
    $region76: #{_lambda_.1} parent=1 // pred_region
      _
    $region77: #{_lambda_.1} parent=1 // pred_fallthru
      _
    // Predicated region
    $region78: #{_lambda_.1} parent=1 // pred_check
      _
    $region79: #{_lambda_.1} parent=1 // pred_check_branch
      %65 = sbr.rel (0) target = $region81
    $region80: #{_lambda_.1} parent=1 // pred_region
      _
    $region81: #{_lambda_.1} parent=1 // pred_fallthru
      _
    %v66 = vld [vmem:[%s0] sm:$0xff]
    %v67 = vld [vmem:[%s0 + $0x8] sm:$0xff]
    %v68 = vlaneseq
    %v69 = vshrl.u32 %v68, 7
    %v70 = vadd.s32 %v69, 8
    %v71 = vlaneseq
    %v72 = vand.u32 %v71, 127
    %v73 = vand.u32 %v72, 15
    %v74 = vld [vmem:[%s1] sm:$0xff]
    %v75 = vld [vmem:[%s1 + $0x8] sm:$0x1]
    %v76 = vrot.slane %v66, 1
    %v77 = vrot.slane %v67, 1
    %vm78 = vcmp.lt.s32.totalorder %v69, 7
    %v79 = vsel %vm78, %v76, %v77
    %v80 = vsel %vm78, %v77, %v76
    %vm81 = vcmp.eq.s32.totalorder %v69, 15
    %vm82 = vcmp.eq.s32.totalorder %v70, 15
    %v83 = vsel %vm81, %v66, %v79
    %v84 = vsel %vm82, %v67, %v80
    %v85 = vrot.slane %v66, 7
    %v86 = vrot.slane %v67, 7
    %vm87 = vcmp.lt.s32.totalorder %v69, 1
    %v88 = vsel %vm87, %v85, %v86
    %v89 = vsel %vm87, %v86, %v85
    %vm90 = vcmp.eq.s32.totalorder %v69, 0
    %vm91 = vcmp.eq.s32.totalorder %v70, 0
    %v92 = vsel %vm90, %v66, %v89
    %v93 = vsel %vm91, %v67, %v88
    %94 = vrot.lane.b32.xlu0 %v92, 127
    %v95 = vpop.permute.xlu0 %94
    %96 = vrot.lane.b32.xlu0 %v93, 127
    %v97 = vpop.permute.xlu0 %96
    %vm98 = vcmp.eq.s32.totalorder %v73, 15
    %v99 = vsel %vm98, %v92, %v95
    %v100 = vsel %vm98, %v93, %v97
    %101 = vrot.lane.b32.xlu0 %v92, 1
    %v102 = vpop.permute.xlu0 %101
    %103 = vrot.lane.b32.xlu0 %v93, 1
    %v104 = vpop.permute.xlu0 %103
    %vm105 = vcmp.eq.s32.totalorder %v73, 0
    %v106 = vsel %vm105, %v92, %v102
    %v107 = vsel %vm105, %v93, %v104
    %v108 = vperm.slane %v74, 0
    %v109 = vmul.f32 %v106, %v108
    %v110 = vmul.f32 %v107, %v108
    %v111 = vperm.slane %v74, 3
    %v112 = vmul.f32 %v92, %v111
    %v113 = vmul.f32 %v93, %v111
    %v114 = vadd.f32 %v109, %v112
    %v115 = vadd.f32 %v110, %v113
    %v116 = vperm.slane %v74, 6
    %v117 = vmul.f32 %v99, %v116
    %v118 = vmul.f32 %v100, %v116
    %v119 = vadd.f32 %v114, %v117
    %v120 = vadd.f32 %v115, %v118
    %121 = vrot.lane.b32.xlu0 %v66, 127
    %v122 = vpop.permute.xlu0 %121
    %123 = vrot.lane.b32.xlu0 %v67, 127
    %v124 = vpop.permute.xlu0 %123
    %v125 = vsel %vm98, %v66, %v122
    %v126 = vsel %vm98, %v67, %v124
    %127 = vrot.lane.b32.xlu0 %v66, 1
    %v128 = vpop.permute.xlu0 %127
    %129 = vrot.lane.b32.xlu0 %v67, 1
    %v130 = vpop.permute.xlu0 %129
    %v131 = vsel %vm105, %v66, %v128
    %v132 = vsel %vm105, %v67, %v130
    %v133 = vperm.slane %v74, 1
    %v134 = vmul.f32 %v131, %v133
    %v135 = vmul.f32 %v132, %v133
    %v136 = vadd.f32 %v119, %v134
    %v137 = vadd.f32 %v120, %v135
    %v138 = vperm.slane %v74, 4
    %v139 = vmul.f32 %v66, %v138
    %v140 = vmul.f32 %v67, %v138
    %v141 = vadd.f32 %v136, %v139
    %v142 = vadd.f32 %v137, %v140
    %v143 = vperm.slane %v74, 7
    %v144 = vmul.f32 %v125, %v143
    %v145 = vmul.f32 %v126, %v143
    %v146 = vadd.f32 %v141, %v144
    %v147 = vadd.f32 %v142, %v145
    %148 = vrot.lane.b32.xlu0 %v83, 127
    %v149 = vpop.permute.xlu0 %148
    %150 = vrot.lane.b32.xlu0 %v84, 127
    %v151 = vpop.permute.xlu0 %150
    %v152 = vsel %vm98, %v83, %v149
    %v153 = vsel %vm98, %v84, %v151
    %154 = vrot.lane.b32.xlu0 %v83, 1
    %v155 = vpop.permute.xlu0 %154
    %156 = vrot.lane.b32.xlu0 %v84, 1
    %v157 = vpop.permute.xlu0 %156
    %v158 = vsel %vm105, %v83, %v155
    %v159 = vsel %vm105, %v84, %v157
    %v160 = vperm.slane %v74, 2
    %v161 = vmul.f32 %v158, %v160
    %v162 = vmul.f32 %v159, %v160
    %v163 = vadd.f32 %v146, %v161
    %v164 = vadd.f32 %v147, %v162
    %v165 = vperm.slane %v74, 5
    %v166 = vmul.f32 %v83, %v165
    %v167 = vmul.f32 %v84, %v165
    %v168 = vadd.f32 %v163, %v166
    %v169 = vadd.f32 %v164, %v167
    %v170 = vperm.slane %v75, 0
    %v171 = vmul.f32 %v152, %v170
    %v172 = vmul.f32 %v153, %v170
    %v173 = vadd.f32 %v168, %v171
    %v174 = vadd.f32 %v169, %v172
    %v175 = vadd.f32 %v173, %v174
    %v176 = vrot.slane %v175, 4
    %v177 = vadd.f32 %v175, %v176
    %v178 = vrot.slane %v177, 2
    %v179 = vadd.f32 %v177, %v178
    %v180 = vrot.slane %v179, 1
    %v181 = vadd.f32 %v179, %v180
    %v182 = vmul.f32 %v173, %v173
    %v183 = vmul.f32 %v174, %v174
    %v184 = vadd.f32 %v182, %v183
    %v185 = vrot.slane %v184, 4
    %v186 = vadd.f32 %v184, %v185
    %v187 = vrot.slane %v186, 2
    %v188 = vadd.f32 %v186, %v187
    %v189 = vrot.slane %v188, 1
    %v190 = vadd.f32 %v188, %v189
    %vm191 = vcmask 1040384
    %v192 = vsel %vm191, %v181, %v190
    %v193 = vld [vmem:[%s4] sm:$0xff]
    %v194 = vld [vmem:[%s4 + $0x8] sm:$0xff]
    %v195 = vld [vmem:[%s4 + $0x10] sm:$0xff]
    %v196 = vld [vmem:[%s4 + $0x18] sm:$0xff]
    %v197 = vld [vmem:[%s4 + $0x20] sm:$0xff]
    %v198 = vld [vmem:[%s4 + $0x28] sm:$0xff]
    %v199 = vld [vmem:[%s4 + $0x30] sm:$0xff]
    %v200 = vld [vmem:[%s4 + $0x38] sm:$0xff]
    %v201 = vld [vmem:[%s4 + $0x40] sm:$0xff]
    %v202 = vld [vmem:[%s4 + $0x48] sm:$0xff]
    %v203 = vld [vmem:[%s4 + $0x50] sm:$0xff]
    %v204 = vld [vmem:[%s4 + $0x58] sm:$0xff]
    %v205 = vld [vmem:[%s4 + $0x60] sm:$0xff]
    %v206 = vld [vmem:[%s4 + $0x68] sm:$0xff]
    %v207 = vld [vmem:[%s4 + $0x70] sm:$0xff]
    %v208 = vld [vmem:[%s4 + $0x78] sm:$0xff]
    %209 = vmatpush.msra.mxu0 %v208
    %210 = vmatpush.msra.mxu0 %v207
    %211 = vmatpush.msra.mxu0 %v206
    %212 = vmatpush.msra.mxu0 %v205
    %213 = vmatpush.msra.mxu0 %v204
    %214 = vmatpush.msra.mxu0 %v203
    %215 = vmatpush.msra.mxu0 %v202
    %216 = vmatpush.msra.mxu0 %v201
    %217 = vmatpush.msra.mxu0 %v200
    %218 = vmatpush.msra.mxu0 %v199
    %219 = vmatpush.msra.mxu0 %v198
    %220 = vmatpush.msra.mxu0 %v197
    %221 = vmatpush.msra.mxu0 %v196
    %222 = vmatpush.msra.mxu0 %v195
    %223 = vmatpush.msra.mxu0 %v194
    %224 = vmatpush.msra.mxu0 %v193
    %225 = vmatmul.f32.gmra.mxu0 %v192
    %v226 = vpop.f32.mrf.mxu0
    %v227 = vadd.f32 0.0, %v226
    %228 = vdwg.mxu0
    %v229 = vmul.f32 %v227, 0.001953125
    %v230 = vmul.f32 %v229, %v229
    %v232 = vrot.slane %v230, 7
    %v234 = vsub.f32 %v229, %v232
    %v235 = vld [vmem:[%s2] sm:$0x1]
    %v236 = vadd.f32 %v234, 1e-05
    %v237 = vrsqrt.pop %v236
    %v238 = vmul.f32 %v237, %v236
    %v239 = vmul.f32 %v238, %v237
    %v240 = vmul.f32 0.5, %v239
    %v241 = vsub.f32 1.5, %v240
    %v242 = vmul.f32 %v237, %v241
    %vm243 = vweird.f32 %v236
    %vm244 = vweird.f32 %v237
    %vm245 = vmor %vm243, %vm244
    %v246 = vsel %vm245, %v237, %v242
    %248 = vst [vmem:[#allocation1] sm:$0xff] %v246
    %s249 = scalar_lea.vmem [#allocation1], 1
    %v250 = vld [vmem:[%s249] ss:$9 sm:$0xff]
    %v252 = vmul.f32 %v235, %v250
    %v253 = vld [vmem:[%s3] sm:$0x1]
    %v254 = vmul.f32 %v229, %v252
    %v255 = vsub.f32 %v253, %v254
    %v257 = vperm.slane %v252, 0
    %v259 = vmul.f32 %v173, %v257
    %v260 = vmul.f32 %v174, %v257
    %v262 = vperm.slane %v255, 0
    %v264 = vadd.f32 %v259, %v262
    %v265 = vadd.f32 %v260, %v262
    %v266 = vmax.f32 %v264, 0.0
    %v267 = vmax.f32 %v265, 0.0
    %v268 = vld [vmem:[%s5] sm:$0xff]
    %v269 = vld [vmem:[%s5 + $0x8] sm:$0xff]
    %v270 = vld [vmem:[%s5 + $0x10] sm:$0xff]
    %v271 = vld [vmem:[%s5 + $0x18] sm:$0xff]
    %v272 = vld [vmem:[%s5 + $0x20] sm:$0xff]
    %v273 = vld [vmem:[%s5 + $0x28] sm:$0xff]
    %v274 = vld [vmem:[%s5 + $0x30] sm:$0xff]
    %v275 = vld [vmem:[%s5 + $0x38] sm:$0xff]
    %v276 = vld [vmem:[%s5 + $0x40] sm:$0xff]
    %v277 = vld [vmem:[%s5 + $0x48] sm:$0xff]
    %v278 = vld [vmem:[%s5 + $0x50] sm:$0xff]
    %v279 = vld [vmem:[%s5 + $0x58] sm:$0xff]
    %v280 = vld [vmem:[%s5 + $0x60] sm:$0xff]
    %v281 = vld [vmem:[%s5 + $0x68] sm:$0xff]
    %v282 = vld [vmem:[%s5 + $0x70] sm:$0xff]
    %v283 = vld [vmem:[%s5 + $0x78] sm:$0xff]
    %284 = vmatpush.msra.mxu0 %v283
    %285 = vmatpush.msra.mxu0 %v282
    %286 = vmatpush.msra.mxu0 %v281
    %287 = vmatpush.msra.mxu0 %v280
    %288 = vmatpush.msra.mxu0 %v279
    %289 = vmatpush.msra.mxu0 %v278
    %290 = vmatpush.msra.mxu0 %v277
    %291 = vmatpush.msra.mxu0 %v276
    %292 = vmatpush.msra.mxu0 %v275
    %293 = vmatpush.msra.mxu0 %v274
    %294 = vmatpush.msra.mxu0 %v273
    %295 = vmatpush.msra.mxu0 %v272
    %296 = vmatpush.msra.mxu0 %v271
    %297 = vmatpush.msra.mxu0 %v270
    %298 = vmatpush.msra.mxu0 %v269
    %299 = vmatpush.msra.mxu0 %v268
    %300 = vmatmul.f32.gmra.mxu0 %v266
    %v301 = vpop.f32.mrf.mxu0
    %v302 = vadd.f32 0.0, %v301
    %303 = vmatmul.f32.gmra.mxu0 %v267
    %v304 = vpop.f32.mrf.mxu0
    %v305 = vadd.f32 0.0, %v304
    %306 = vdwg.mxu0
    %vm307 = vcmask 523264
    %v308 = vsel %vm307, %v302, 0.0
    %v309 = vsel %vm307, %v305, 0.0
    %v310 = vadd.f32 %v308, %v309
    %v311 = vrot.slane %v310, 4
    %v312 = vadd.f32 %v310, %v311
    %v313 = vrot.slane %v312, 2
    %v314 = vadd.f32 %v312, %v313
    %v315 = vrot.slane %v314, 1
    %v316 = vadd.f32 %v314, %v315
    %v317 = vmul.f32 %v302, %v302
    %v318 = vmul.f32 %v305, %v305
    %v319 = vsel %vm307, %v317, 0.0
    %v320 = vsel %vm307, %v318, 0.0
    %v321 = vadd.f32 %v319, %v320
    %v322 = vrot.slane %v321, 4
    %v323 = vadd.f32 %v321, %v322
    %v324 = vrot.slane %v323, 2
    %v325 = vadd.f32 %v323, %v324
    %v326 = vrot.slane %v325, 1
    %v327 = vadd.f32 %v325, %v326
    %v328 = vsel %vm191, %v316, %v327
    %v329 = vld [vmem:[%s8] sm:$0xff]
    %v330 = vld [vmem:[%s8 + $0x8] sm:$0xff]
    %v331 = vld [vmem:[%s8 + $0x10] sm:$0xff]
    %v332 = vld [vmem:[%s8 + $0x18] sm:$0xff]
    %v333 = vld [vmem:[%s8 + $0x20] sm:$0xff]
    %v334 = vld [vmem:[%s8 + $0x28] sm:$0xff]
    %v335 = vld [vmem:[%s8 + $0x30] sm:$0xff]
    %v336 = vld [vmem:[%s8 + $0x38] sm:$0xff]
    %v338 = vsel %vm307, %v328, 0
    %340 = vmatpush.msra.mxu0 0.0
    %341 = vmatpush.msra.mxu0 0.0
    %342 = vmatpush.msra.mxu0 0.0
    %343 = vmatpush.msra.mxu0 0.0
    %344 = vmatpush.msra.mxu0 0.0
    %345 = vmatpush.msra.mxu0 0.0
    %346 = vmatpush.msra.mxu0 0.0
    %347 = vmatpush.msra.mxu0 0.0
    %348 = vmatpush.msra.mxu0 %v336
    %349 = vmatpush.msra.mxu0 %v335
    %350 = vmatpush.msra.mxu0 %v334
    %351 = vmatpush.msra.mxu0 %v333
    %352 = vmatpush.msra.mxu0 %v332
    %353 = vmatpush.msra.mxu0 %v331
    %354 = vmatpush.msra.mxu0 %v330
    %355 = vmatpush.msra.mxu0 %v329
    %356 = vmatmul.f32.gmra.mxu0 %v338
    %v357 = vpop.f32.mrf.mxu0
    %v358 = vadd.f32 0.0, %v357
    %359 = vdwg.mxu0
    %v360 = vmul.f32 %v358, 0.001953125
    %v361 = vmul.f32 %v360, %v360
    %v363 = vrot.slane %v361, 7
    %v365 = vsub.f32 %v360, %v363
    %v366 = vld [vmem:[%s6] sm:$0x1]
    %v367 = vadd.f32 %v365, 1e-05
    %v368 = vrsqrt.pop %v367
    %v369 = vmul.f32 %v368, %v367
    %v370 = vmul.f32 %v369, %v368
    %v371 = vmul.f32 0.5, %v370
    %v372 = vsub.f32 1.5, %v371
    %v373 = vmul.f32 %v368, %v372
    %vm374 = vweird.f32 %v367
    %vm375 = vweird.f32 %v368
    %vm376 = vmor %vm374, %vm375
    %v377 = vsel %vm376, %v368, %v373
    %379 = vst [vmem:[#allocation1] sm:$0xff] %v377
    %s380 = scalar_lea.vmem [#allocation1], 1
    %v381 = vld [vmem:[%s380] ss:$9 sm:$0xff]
    %v383 = vmul.f32 %v366, %v381
    %v384 = vld [vmem:[%s7] sm:$0x1]
    %v385 = vmul.f32 %v360, %v383
    %v386 = vsub.f32 %v384, %v385
    %v388 = vperm.slane %v383, 0
    %v390 = vmul.f32 %v302, %v388
    %v391 = vmul.f32 %v305, %v388
    %v393 = vperm.slane %v386, 0
    %v395 = vadd.f32 %v390, %v393
    %v396 = vadd.f32 %v391, %v393
    %v397 = vmax.f32 %v395, 0.0
    %v398 = vmax.f32 %v396, 0.0
    %v399 = vld [vmem:[%s9] sm:$0xff]
    %v400 = vld [vmem:[%s9 + $0x8] sm:$0x1]
    %v401 = vrot.slane %v397, 1
    %v402 = vrot.slane %v398, 1
    %v403 = vsel %vm78, %v401, %v402
    %v404 = vsel %vm78, %v402, %v401
    %v405 = vsel %vm81, %v397, %v403
    %v406 = vsel %vm82, %v398, %v404
    %v407 = vrot.slane %v397, 7
    %v408 = vrot.slane %v398, 7
    %v409 = vsel %vm87, %v407, %v408
    %v410 = vsel %vm87, %v408, %v407
    %v411 = vsel %vm90, %v397, %v410
    %v412 = vsel %vm91, %v398, %v409
    %vm413 = vcmask 1048064
    %414 = vrot.lane.b32.xlu0 %v411, 64
    %v415 = vpop.permute.xlu0 %414
    %v416 = vsel %vm413, %v415, %v411
    %417 = vrot.lane.b32.xlu0 %v412, 64
    %v418 = vpop.permute.xlu0 %417
    %v419 = vsel %vm413, %v418, %v412
    %420 = vrot.lane.b32.xlu0 %v416, 64
    %v421 = vpop.permute.xlu0 %420
    %422 = vrot.lane.b32.xlu0 %v419, 64
    %v423 = vpop.permute.xlu0 %422
    %v424 = vsel %vm413, %v421, %v411
    %v425 = vsel %vm413, %v423, %v412
    %428 = vrot.lane.b32.xlu0 %v424, 127
    %v429 = vpop.permute.xlu0 %428
    %430 = vrot.lane.b32.xlu0 %v425, 127
    %v431 = vpop.permute.xlu0 %430
    %v434 = vsel %vm98, %v411, %v429
    %v435 = vsel %vm98, %v412, %v431
    %436 = vrot.lane.b32.xlu0 %v424, 65
    %v437 = vpop.permute.xlu0 %436
    %438 = vrot.lane.b32.xlu0 %v425, 65
    %v439 = vpop.permute.xlu0 %438
    %v442 = vsel %vm105, %v411, %v437
    %v443 = vsel %vm105, %v412, %v439
    %v444 = vperm.slane %v399, 0
    %v445 = vmul.f32 %v442, %v444
    %v446 = vmul.f32 %v443, %v444
    %v447 = vperm.slane %v399, 3
    %v448 = vmul.f32 %v411, %v447
    %v449 = vmul.f32 %v412, %v447
    %v450 = vadd.f32 %v445, %v448
    %v451 = vadd.f32 %v446, %v449
    %v452 = vperm.slane %v399, 6
    %v453 = vmul.f32 %v434, %v452
    %v454 = vmul.f32 %v435, %v452
    %v455 = vadd.f32 %v450, %v453
    %v456 = vadd.f32 %v451, %v454
    %457 = vrot.lane.b32.xlu0 %v397, 64
    %v458 = vpop.permute.xlu0 %457
    %v459 = vsel %vm413, %v458, %v397
    %460 = vrot.lane.b32.xlu0 %v398, 64
    %v461 = vpop.permute.xlu0 %460
    %v462 = vsel %vm413, %v461, %v398
    %463 = vrot.lane.b32.xlu0 %v459, 64
    %v464 = vpop.permute.xlu0 %463
    %465 = vrot.lane.b32.xlu0 %v462, 64
    %v466 = vpop.permute.xlu0 %465
    %v467 = vsel %vm413, %v464, %v397
    %v468 = vsel %vm413, %v466, %v398
    %471 = vrot.lane.b32.xlu0 %v467, 127
    %v472 = vpop.permute.xlu0 %471
    %473 = vrot.lane.b32.xlu0 %v468, 127
    %v474 = vpop.permute.xlu0 %473
    %v477 = vsel %vm98, %v397, %v472
    %v478 = vsel %vm98, %v398, %v474
    %479 = vrot.lane.b32.xlu0 %v467, 65
    %v480 = vpop.permute.xlu0 %479
    %481 = vrot.lane.b32.xlu0 %v468, 65
    %v482 = vpop.permute.xlu0 %481
    %v485 = vsel %vm105, %v397, %v480
    %v486 = vsel %vm105, %v398, %v482
    %v487 = vperm.slane %v399, 1
    %v488 = vmul.f32 %v485, %v487
    %v489 = vmul.f32 %v486, %v487
    %v490 = vadd.f32 %v455, %v488
    %v491 = vadd.f32 %v456, %v489
    %v492 = vperm.slane %v399, 4
    %v493 = vmul.f32 %v397, %v492
    %v494 = vmul.f32 %v398, %v492
    %v495 = vadd.f32 %v490, %v493
    %v496 = vadd.f32 %v491, %v494
    %v497 = vperm.slane %v399, 7
    %v498 = vmul.f32 %v477, %v497
    %v499 = vmul.f32 %v478, %v497
    %v500 = vadd.f32 %v495, %v498
    %v501 = vadd.f32 %v496, %v499
    %502 = vrot.lane.b32.xlu0 %v405, 64
    %v503 = vpop.permute.xlu0 %502
    %v504 = vsel %vm413, %v503, %v405
    %505 = vrot.lane.b32.xlu0 %v406, 64
    %v506 = vpop.permute.xlu0 %505
    %v507 = vsel %vm413, %v506, %v406
    %508 = vrot.lane.b32.xlu0 %v504, 64
    %v509 = vpop.permute.xlu0 %508
    %510 = vrot.lane.b32.xlu0 %v507, 64
    %v511 = vpop.permute.xlu0 %510
    %v512 = vsel %vm413, %v509, %v405
    %v513 = vsel %vm413, %v511, %v406
    %516 = vrot.lane.b32.xlu0 %v512, 127
    %v517 = vpop.permute.xlu0 %516
    %518 = vrot.lane.b32.xlu0 %v513, 127
    %v519 = vpop.permute.xlu0 %518
    %v522 = vsel %vm98, %v405, %v517
    %v523 = vsel %vm98, %v406, %v519
    %524 = vrot.lane.b32.xlu0 %v512, 65
    %v525 = vpop.permute.xlu0 %524
    %526 = vrot.lane.b32.xlu0 %v513, 65
    %v527 = vpop.permute.xlu0 %526
    %v530 = vsel %vm105, %v405, %v525
    %v531 = vsel %vm105, %v406, %v527
    %v532 = vperm.slane %v399, 2
    %v533 = vmul.f32 %v530, %v532
    %v534 = vmul.f32 %v531, %v532
    %v535 = vadd.f32 %v500, %v533
    %v536 = vadd.f32 %v501, %v534
    %v537 = vperm.slane %v399, 5
    %v538 = vmul.f32 %v405, %v537
    %v539 = vmul.f32 %v406, %v537
    %v540 = vadd.f32 %v535, %v538
    %v541 = vadd.f32 %v536, %v539
    %v542 = vperm.slane %v400, 0
    %v543 = vmul.f32 %v522, %v542
    %v544 = vmul.f32 %v523, %v542
    %v545 = vadd.f32 %v540, %v543
    %v546 = vadd.f32 %v541, %v544
    %v547 = vsel %vm307, %v545, 0.0
    %v548 = vsel %vm307, %v546, 0.0
    %v549 = vadd.f32 %v547, %v548
    %v550 = vrot.slane %v549, 4
    %v551 = vadd.f32 %v549, %v550
    %v552 = vrot.slane %v551, 2
    %v553 = vadd.f32 %v551, %v552
    %v554 = vrot.slane %v553, 1
    %v555 = vadd.f32 %v553, %v554
    %v556 = vmul.f32 %v545, %v545
    %v557 = vmul.f32 %v546, %v546
    %v558 = vsel %vm307, %v556, 0.0
    %v559 = vsel %vm307, %v557, 0.0
    %v560 = vadd.f32 %v558, %v559
    %v561 = vrot.slane %v560, 4
    %v562 = vadd.f32 %v560, %v561
    %v563 = vrot.slane %v562, 2
    %v564 = vadd.f32 %v562, %v563
    %v565 = vrot.slane %v564, 1
    %v566 = vadd.f32 %v564, %v565
    %v567 = vsel %vm191, %v555, %v566
    %v568 = vld [vmem:[%s12] sm:$0xff]
    %v569 = vld [vmem:[%s12 + $0x8] sm:$0xff]
    %v570 = vld [vmem:[%s12 + $0x10] sm:$0xff]
    %v571 = vld [vmem:[%s12 + $0x18] sm:$0xff]
    %v572 = vld [vmem:[%s12 + $0x20] sm:$0xff]
    %v573 = vld [vmem:[%s12 + $0x28] sm:$0xff]
    %v574 = vld [vmem:[%s12 + $0x30] sm:$0xff]
    %v575 = vld [vmem:[%s12 + $0x38] sm:$0xff]
    %v577 = vsel %vm307, %v567, 0
    %579 = vmatpush.msra.mxu0 0.0
    %580 = vmatpush.msra.mxu0 0.0
    %581 = vmatpush.msra.mxu0 0.0
    %582 = vmatpush.msra.mxu0 0.0
    %583 = vmatpush.msra.mxu0 0.0
    %584 = vmatpush.msra.mxu0 0.0
    %585 = vmatpush.msra.mxu0 0.0
    %586 = vmatpush.msra.mxu0 0.0
    %587 = vmatpush.msra.mxu0 %v575
    %588 = vmatpush.msra.mxu0 %v574
    %589 = vmatpush.msra.mxu0 %v573
    %590 = vmatpush.msra.mxu0 %v572
    %591 = vmatpush.msra.mxu0 %v571
    %592 = vmatpush.msra.mxu0 %v570
    %593 = vmatpush.msra.mxu0 %v569
    %594 = vmatpush.msra.mxu0 %v568
    %595 = vmatmul.f32.gmra.mxu0 %v577
    %v596 = vpop.f32.mrf.mxu0
    %v597 = vadd.f32 0.0, %v596
    %598 = vdwg.mxu0
    %v599 = vmul.f32 %v597, 0.001953125
    %v600 = vmul.f32 %v599, %v599
    %v602 = vrot.slane %v600, 7
    %v604 = vsub.f32 %v599, %v602
    %v605 = vld [vmem:[%s10] sm:$0x1]
    %v606 = vadd.f32 %v604, 1e-05
    %v607 = vrsqrt.pop %v606
    %v608 = vmul.f32 %v607, %v606
    %v609 = vmul.f32 %v608, %v607
    %v610 = vmul.f32 0.5, %v609
    %v611 = vsub.f32 1.5, %v610
    %v612 = vmul.f32 %v607, %v611
    %vm613 = vweird.f32 %v606
    %vm614 = vweird.f32 %v607
    %vm615 = vmor %vm613, %vm614
    %v616 = vsel %vm615, %v607, %v612
    %618 = vst [vmem:[#allocation1] sm:$0xff] %v616
    %s619 = scalar_lea.vmem [#allocation1], 1
    %v620 = vld [vmem:[%s619] ss:$9 sm:$0xff]
    %v622 = vmul.f32 %v605, %v620
    %v623 = vld [vmem:[%s11] sm:$0x1]
    %v624 = vmul.f32 %v599, %v622
    %v625 = vsub.f32 %v623, %v624
    %v627 = vperm.slane %v622, 0
    %v629 = vmul.f32 %v545, %v627
    %v630 = vmul.f32 %v546, %v627
    %v632 = vperm.slane %v625, 0
    %v634 = vadd.f32 %v629, %v632
    %v635 = vadd.f32 %v630, %v632
    %v636 = vmax.f32 %v634, 0.0
    %v637 = vmax.f32 %v635, 0.0
    %v638 = vld [vmem:[%s13] sm:$0xff]
    %v639 = vld [vmem:[%s13 + $0x8] sm:$0xff]
    %v640 = vld [vmem:[%s13 + $0x10] sm:$0xff]
    %v641 = vld [vmem:[%s13 + $0x18] sm:$0xff]
    %v642 = vld [vmem:[%s13 + $0x20] sm:$0xff]
    %v643 = vld [vmem:[%s13 + $0x28] sm:$0xff]
    %v644 = vld [vmem:[%s13 + $0x30] sm:$0xff]
    %v645 = vld [vmem:[%s13 + $0x38] sm:$0xff]
    %v647 = vsel %vm307, %v636, 0
    %v650 = vsel %vm307, %v637, 0
    %652 = vmatpush.msra.mxu0 0.0
    %653 = vmatpush.msra.mxu0 0.0
    %654 = vmatpush.msra.mxu0 0.0
    %655 = vmatpush.msra.mxu0 0.0
    %656 = vmatpush.msra.mxu0 0.0
    %657 = vmatpush.msra.mxu0 0.0
    %658 = vmatpush.msra.mxu0 0.0
    %659 = vmatpush.msra.mxu0 0.0
    %660 = vmatpush.msra.mxu0 %v645
    %661 = vmatpush.msra.mxu0 %v644
    %662 = vmatpush.msra.mxu0 %v643
    %663 = vmatpush.msra.mxu0 %v642
    %664 = vmatpush.msra.mxu0 %v641
    %665 = vmatpush.msra.mxu0 %v640
    %666 = vmatpush.msra.mxu0 %v639
    %667 = vmatpush.msra.mxu0 %v638
    %668 = vmatmul.f32.gmra.mxu0 %v647
    %v669 = vpop.f32.mrf.mxu0
    %v670 = vadd.f32 0.0, %v669
    %671 = vmatmul.f32.gmra.mxu0 %v650
    %v672 = vpop.f32.mrf.mxu0
    %v673 = vadd.f32 0.0, %v672
    %674 = vdwg.mxu0
    %vm675 = vcmask 261120
    %v676 = vsel %vm675, %v670, 0.0
    %v677 = vsel %vm675, %v673, 0.0
    %v678 = vadd.f32 %v676, %v677
    %v679 = vrot.slane %v678, 4
    %v680 = vadd.f32 %v678, %v679
    %v681 = vrot.slane %v680, 2
    %v682 = vadd.f32 %v680, %v681
    %v683 = vrot.slane %v682, 1
    %v684 = vadd.f32 %v682, %v683
    %v685 = vmul.f32 %v670, %v670
    %v686 = vmul.f32 %v673, %v673
    %v687 = vsel %vm675, %v685, 0.0
    %v688 = vsel %vm675, %v686, 0.0
    %v689 = vadd.f32 %v687, %v688
    %v690 = vrot.slane %v689, 4
    %v691 = vadd.f32 %v689, %v690
    %v692 = vrot.slane %v691, 2
    %v693 = vadd.f32 %v691, %v692
    %v694 = vrot.slane %v693, 1
    %v695 = vadd.f32 %v693, %v694
    %v696 = vsel %vm191, %v684, %v695
    %v697 = vld [vmem:[%s16] sm:$0xff]
    %v698 = vld [vmem:[%s16 + $0x8] sm:$0xff]
    %v699 = vld [vmem:[%s16 + $0x10] sm:$0xff]
    %v700 = vld [vmem:[%s16 + $0x18] sm:$0xff]
    %v702 = vsel %vm675, %v696, 0
    %704 = vmatpush.msra.mxu0 0.0
    %705 = vmatpush.msra.mxu0 0.0
    %706 = vmatpush.msra.mxu0 0.0
    %707 = vmatpush.msra.mxu0 0.0
    %708 = vmatpush.msra.mxu0 0.0
    %709 = vmatpush.msra.mxu0 0.0
    %710 = vmatpush.msra.mxu0 0.0
    %711 = vmatpush.msra.mxu0 0.0
    %712 = vmatpush.msra.mxu0 0.0
    %713 = vmatpush.msra.mxu0 0.0
    %714 = vmatpush.msra.mxu0 0.0
    %715 = vmatpush.msra.mxu0 0.0
    %716 = vmatpush.msra.mxu0 %v700
    %717 = vmatpush.msra.mxu0 %v699
    %718 = vmatpush.msra.mxu0 %v698
    %719 = vmatpush.msra.mxu0 %v697
    %720 = vmatmul.f32.gmra.mxu0 %v702
    %v721 = vpop.f32.mrf.mxu0
    %v722 = vadd.f32 0.0, %v721
    %723 = vdwg.mxu0
    %v724 = vmul.f32 %v722, 0.001953125
    %v725 = vmul.f32 %v724, %v724
    %v727 = vrot.slane %v725, 7
    %v729 = vsub.f32 %v724, %v727
    %v730 = vld [vmem:[%s14] sm:$0x1]
    %v731 = vadd.f32 %v729, 1e-05
    %v732 = vrsqrt.pop %v731
    %v733 = vmul.f32 %v732, %v731
    %v734 = vmul.f32 %v733, %v732
    %v735 = vmul.f32 0.5, %v734
    %v736 = vsub.f32 1.5, %v735
    %v737 = vmul.f32 %v732, %v736
    %vm738 = vweird.f32 %v731
    %vm739 = vweird.f32 %v732
    %vm740 = vmor %vm738, %vm739
    %v741 = vsel %vm740, %v732, %v737
    %743 = vst [vmem:[#allocation1] sm:$0xff] %v741
    %s744 = scalar_lea.vmem [#allocation1], 1
    %v745 = vld [vmem:[%s744] ss:$9 sm:$0xff]
    %v747 = vmul.f32 %v730, %v745
    %v748 = vld [vmem:[%s15] sm:$0x1]
    %v749 = vmul.f32 %v724, %v747
    %v750 = vsub.f32 %v748, %v749
    %v752 = vperm.slane %v747, 0
    %v754 = vmul.f32 %v670, %v752
    %v755 = vmul.f32 %v673, %v752
    %v757 = vperm.slane %v750, 0
    %v759 = vadd.f32 %v754, %v757
    %v760 = vadd.f32 %v755, %v757
    %v761 = vmax.f32 %v759, 0.0
    %v762 = vmax.f32 %v760, 0.0
    %v763 = vrot.slane %v761, 1
    %v764 = vrot.slane %v762, 1
    %v765 = vsel %vm78, %v763, %v764
    %v766 = vsel %vm78, %v764, %v763
    %v767 = vsel %vm81, %v761, %v765
    %v768 = vsel %vm82, %v762, %v766
    %v769 = vrot.slane %v761, 7
    %v770 = vrot.slane %v762, 7
    %v771 = vsel %vm87, %v769, %v770
    %v772 = vsel %vm87, %v770, %v769
    %v773 = vsel %vm90, %v761, %v772
    %v774 = vsel %vm91, %v762, %v771
    %777 = vrot.lane.b32.xlu0 %v761, 16
    %v778 = vpop.permute.xlu0 %777
    %779 = vrot.lane.b32.xlu0 %v762, 16
    %v780 = vpop.permute.xlu0 %779
    %785 = vrot.lane.b32.xlu0 %v767, 32
    %v786 = vpop.permute.xlu0 %785
    %787 = vrot.lane.b32.xlu0 %v768, 32
    %v788 = vpop.permute.xlu0 %787
    %vm791 = vcmask 130048
    %v792 = vsel %vm791, %v773, %v778
    %v793 = vsel %vm791, %v774, %v780
    %v794 = vsel %vm675, %v792, %v786
    %v795 = vsel %vm675, %v793, %v788
    %798 = vrot.lane.b32.xlu0 %v773, 112
    %v799 = vpop.permute.xlu0 %798
    %800 = vrot.lane.b32.xlu0 %v774, 112
    %v801 = vpop.permute.xlu0 %800
    %804 = vrot.lane.b32.xlu0 %v767, 16
    %v805 = vpop.permute.xlu0 %804
    %806 = vrot.lane.b32.xlu0 %v768, 16
    %v807 = vpop.permute.xlu0 %806
    %v810 = vsel %vm791, %v799, %v761
    %v811 = vsel %vm791, %v801, %v762
    %v812 = vsel %vm675, %v810, %v805
    %v813 = vsel %vm675, %v811, %v807
    %v814 = vld [vmem:[%s17] sm:$0xff]
    %v815 = vld [vmem:[%s17 + $0x8] sm:$0xff]
    %v816 = vld [vmem:[%s17 + $0x10] sm:$0xff]
    %v817 = vld [vmem:[%s17 + $0x18] sm:$0xff]
    %v818 = vld [vmem:[%s17 + $0x20] sm:$0xff]
    %v819 = vld [vmem:[%s17 + $0x28] sm:$0xff]
    %vm820 = vcmask 392192
    %v822 = vsel %vm820, %v794, 0
    %v825 = vsel %vm820, %v795, 0
    %v828 = vsel %vm820, %v812, 0
    %v831 = vsel %vm820, %v813, 0
    %833 = vmatpush.msra.mxu0 0.0
    %834 = vmatpush.msra.mxu0 0.0
    %835 = vmatpush.msra.mxu0 0.0
    %836 = vmatpush.msra.mxu0 0.0
    %837 = vmatpush.msra.mxu0 0.0
    %838 = vmatpush.msra.mxu0 0.0
    %839 = vmatpush.msra.mxu0 0.0
    %840 = vmatpush.msra.mxu0 0.0
    %841 = vmatpush.msra.mxu0 0.0
    %842 = vmatpush.msra.mxu0 0.0
    %843 = vmatpush.msra.mxu0 %v819
    %844 = vmatpush.msra.mxu0 %v818
    %845 = vmatpush.msra.mxu0 %v817
    %846 = vmatpush.msra.mxu0 %v816
    %847 = vmatpush.msra.mxu0 %v815
    %848 = vmatpush.msra.mxu0 %v814
    %849 = vmatmul.f32.gmra.mxu0 %v822
    %v850 = vpop.f32.mrf.mxu0
    %v851 = vadd.f32 0.0, %v850
    %852 = vmatmul.f32.gmra.mxu0 %v825
    %v853 = vpop.f32.mrf.mxu0
    %v854 = vadd.f32 0.0, %v853
    %855 = vmatmul.f32.gmra.mxu0 %v828
    %v856 = vpop.f32.mrf.mxu0
    %v857 = vadd.f32 0.0, %v856
    %858 = vmatmul.f32.gmra.mxu0 %v831
    %v859 = vpop.f32.mrf.mxu0
    %v860 = vadd.f32 0.0, %v859
    %861 = vdwg.mxu0
    %v862 = vsel %vm675, %v851, 0.0
    %863 = vadd.xlane.f32.xlu0 %v862
    %v864 = vpop.xlane.xlu0 %863
    %v865 = vsel %vm675, %v854, 0.0
    %866 = vadd.xlane.f32.xlu0 %v865
    %v867 = vpop.xlane.xlu0 %866
    %v868 = vsel %vm675, %v857, 0.0
    %869 = vadd.xlane.f32.xlu0 %v868
    %v870 = vpop.xlane.xlu0 %869
    %v871 = vsel %vm675, %v860, 0.0
    %872 = vadd.xlane.f32.xlu0 %v871
    %v873 = vpop.xlane.xlu0 %872
    %v874 = vrcp.pop 32.0
    %v875 = vmul.f32 32.0, %v874
    %v876 = vsub.f32 1.0, %v875
    %v877 = vmul.f32 %v874, %v876
    %v878 = vadd.f32 %v874, %v877
    %vm879 = vweird.f32 %v874
    %v880 = vsel %vm879, %v874, %v878
    %v881 = vmul.f32 %v864, %v880
    %v882 = vmul.f32 %v867, %v880
    %v883 = vmul.f32 %v870, %v880
    %v884 = vmul.f32 %v873, %v880
    %v885 = vsub.f32 %v851, %v881
    %v886 = vsub.f32 %v854, %v882
    %v887 = vsub.f32 %v857, %v883
    %v888 = vsub.f32 %v860, %v884
    %v889 = vmul.f32 %v885, %v885
    %v890 = vmul.f32 %v886, %v886
    %v891 = vmul.f32 %v887, %v887
    %v892 = vmul.f32 %v888, %v888
    %v893 = vsel %vm675, %v889, 0.0
    %894 = vadd.xlane.f32.xlu0 %v893
    %v895 = vpop.xlane.xlu0 %894
    %v896 = vsel %vm675, %v890, 0.0
    %897 = vadd.xlane.f32.xlu0 %v896
    %v898 = vpop.xlane.xlu0 %897
    %v899 = vsel %vm675, %v891, 0.0
    %900 = vadd.xlane.f32.xlu0 %v899
    %v901 = vpop.xlane.xlu0 %900
    %v902 = vsel %vm675, %v892, 0.0
    %903 = vadd.xlane.f32.xlu0 %v902
    %v904 = vpop.xlane.xlu0 %903
    %v905 = vmul.f32 %v895, %v880
    %v906 = vmul.f32 %v898, %v880
    %v907 = vmul.f32 %v901, %v880
    %v908 = vmul.f32 %v904, %v880
    %v909 = vadd.f32 %v905, 1e-05
    %v910 = vadd.f32 %v906, 1e-05
    %v911 = vadd.f32 %v907, 1e-05
    %v912 = vadd.f32 %v908, 1e-05
    %v913 = vrsqrt.pop %v909
    %v914 = vmul.f32 %v913, %v909
    %v915 = vmul.f32 %v914, %v913
    %v916 = vmul.f32 0.5, %v915
    %v917 = vsub.f32 1.5, %v916
    %v918 = vmul.f32 %v913, %v917
    %vm919 = vweird.f32 %v909
    %vm920 = vweird.f32 %v913
    %vm921 = vmor %vm919, %vm920
    %v922 = vsel %vm921, %v913, %v918
    %v923 = vrsqrt.pop %v910
    %v924 = vmul.f32 %v923, %v910
    %v925 = vmul.f32 %v924, %v923
    %v926 = vmul.f32 0.5, %v925
    %v927 = vsub.f32 1.5, %v926
    %v928 = vmul.f32 %v923, %v927
    %vm929 = vweird.f32 %v910
    %vm930 = vweird.f32 %v923
    %vm931 = vmor %vm929, %vm930
    %v932 = vsel %vm931, %v923, %v928
    %v933 = vrsqrt.pop %v911
    %v934 = vmul.f32 %v933, %v911
    %v935 = vmul.f32 %v934, %v933
    %v936 = vmul.f32 0.5, %v935
    %v937 = vsub.f32 1.5, %v936
    %v938 = vmul.f32 %v933, %v937
    %vm939 = vweird.f32 %v911
    %vm940 = vweird.f32 %v933
    %vm941 = vmor %vm939, %vm940
    %v942 = vsel %vm941, %v933, %v938
    %v943 = vrsqrt.pop %v912
    %v944 = vmul.f32 %v943, %v912
    %v945 = vmul.f32 %v944, %v943
    %v946 = vmul.f32 0.5, %v945
    %v947 = vsub.f32 1.5, %v946
    %v948 = vmul.f32 %v943, %v947
    %vm949 = vweird.f32 %v912
    %vm950 = vweird.f32 %v943
    %vm951 = vmor %vm949, %vm950
    %v952 = vsel %vm951, %v943, %v948
    %v953 = vmul.f32 %v885, %v922
    %v954 = vmul.f32 %v886, %v932
    %v955 = vmul.f32 %v887, %v942
    %v956 = vmul.f32 %v888, %v952
    %v957 = vld [vmem:[%s18] sm:$0x1]
    %v959 = vperm.slane %v957, 0
    %v961 = vmul.f32 %v953, %v959
    %v962 = vmul.f32 %v954, %v959
    %v963 = vmul.f32 %v955, %v959
    %v964 = vmul.f32 %v956, %v959
    %v965 = vld [vmem:[%s19] sm:$0x1]
    %v967 = vperm.slane %v965, 0
    %v969 = vadd.f32 %v961, %v967
    %v970 = vadd.f32 %v962, %v967
    %v971 = vadd.f32 %v963, %v967
    %v972 = vadd.f32 %v964, %v967
    %v973 = vmax.f32 %v969, 0.0
    %v974 = vmax.f32 %v970, 0.0
    %v975 = vmax.f32 %v971, 0.0
    %v976 = vmax.f32 %v972, 0.0
    %977 = vst.msk [vmem:[#allocation2] sm:$0xff] %vm675, %v973
    %978 = vst.msk [vmem:[#allocation2 + $0x8] sm:$0xff] %vm675, %v974
    %979 = vst.msk [vmem:[#allocation2 + $0x10] sm:$0xff] %vm675, %v975
    %980 = vst.msk [vmem:[#allocation2 + $0x18] sm:$0xff] %vm675, %v976
    // Predicated region
    $region82: #{_lambda_.1} parent=1 // pred_check
      _
    $region83: #{_lambda_.1} parent=1 // pred_check_branch
      %982 = sbr.rel (0) target = $region85
    $region84: #{_lambda_.1} parent=1 // pred_region
      %984 = vsyncadd [#allocation3], 0
      %s985 = sshll.u32 [#allocation2], 4
      %s986 = int_to_ptr.vmem [resolvable:$true] %s985
      %s987 = sshll.u32 %s20, 4
      %s988 = int_to_ptr.hbm [resolvable:$true] %s987
      %993 = dma.vmem_to_hbm [thread:$0]  %s986, 512, %s988, [#allocation3], 128, 128, 8
    $region85: #{_lambda_.1} parent=1 // pred_fallthru
      _
    // Predicated region
    $region86: #{_lambda_.1} parent=1 // pred_check
      _
    $region87: #{_lambda_.1} parent=1 // pred_check_branch
      %995 = sbr.rel (0) target = $region89
    $region88: #{_lambda_.1} parent=1 // pred_region
      %997 = dma.done [#allocation3], 512
    $region89: #{_lambda_.1} parent=1 // pred_fallthru
      _
    %998 = vsyncpa [#allocation3], 1

</llo_original>
